<compile_context>
chip_gen: v7x
topology: tpu7x:2x2x1
jax: 0.10.0
libtpu: 0.0.40
codegen_flags: <defaults>
</compile_context>

<pallas_src>
import math
import functools

import jax
import jax.numpy as jnp
from jax.experimental import pallas as pl
from jax.experimental.pallas import tpu as pltpu

EPS = 1e-5  # PyTorch GroupNorm default eps


# ---------------- fused Pallas kernel ----------------

def _self_attention_kernel(x_ref, xq_ref, avg_ref, g_ref, b_ref,
                           wq_ref, wkv_ref, wo_ref, bo_ref, o_ref,
                           *, n_head, channel):
    C = channel
    hd = C // n_head

    x = x_ref[0].astype(jnp.float32)          # (C, HW)  full spatial extent (stats + K/V)
    xq = xq_ref[0].astype(jnp.float32)        # (C, HWq) this step's query columns (+ residual)
    HW = x.shape[1]
    inv_hw = 1.0 / HW

    # ---- GroupNorm: per-channel stats over the full spatial extent, group-averaged in ONE
    #      MXU pass via the (C,C) block-diagonal matrix kept resident in VMEM.
    m_c = jnp.sum(x, axis=1, keepdims=True) * inv_hw          # (C, 1)  E[x]   per channel
    s2_c = jnp.sum(x * x, axis=1, keepdims=True) * inv_hw     # (C, 1)  E[x^2] per channel
    lane = jax.lax.broadcasted_iota(jnp.int32, (C, 2), 1)
    stats = jnp.where(lane == 0, m_c, s2_c)                   # (C, 2) stacked rhs (no concat)
    gstats = jnp.dot(avg_ref[...], stats,
                     preferred_element_type=jnp.float32)      # (C, 2) group mean / E[x^2]
    gm = gstats[:, 0:1]
    gv = gstats[:, 1:2] - gm * gm                             # group variance
    a_n = jax.lax.rsqrt(gv + EPS) * g_ref[...]                # fused affine: h = a*x + c
    c_n = b_ref[...] - gm * a_n
    h = x * a_n + c_n                                         # (C, HW)  normalized keys/values
    hq = xq * a_n + c_n                                       # (C, HWq) normalized queries

    # ---- fused all-head projections (single matmuls, K = C contraction, lane-dense) ----
    kv = jnp.dot(wkv_ref[...], h, preferred_element_type=jnp.float32)     # (2C, HW)
    q_all = jnp.dot(wq_ref[...], hq, preferred_element_type=jnp.float32)  # (C, HWq)

    attn_scale = 1.0 / math.sqrt(C)   # PyTorch divides by sqrt(channel), NOT sqrt(head_dim)

    head_outs = []
    for hh in range(n_head):                                   # static, tiny head count
        q = q_all[hh * hd:(hh + 1) * hd]                       # (hd, HWq) sublane slice
        k = kv[2 * hh * hd:(2 * hh + 1) * hd]                  # (hd, HW)
        v = kv[(2 * hh + 1) * hd:(2 * hh + 2) * hd]            # (hd, HW)

        # fold the softmax scale into q (few vregs) and cast MXU operands to bf16
        qt = (jnp.transpose(q) * attn_scale).astype(jnp.bfloat16)   # (HWq, hd)
        k_b = k.astype(jnp.bfloat16)
        v_b = v.astype(jnp.bfloat16)

        s = jnp.dot(qt, k_b, preferred_element_type=jnp.float32)    # (HWq, HW) logits, f32
        s = s - jnp.max(s, axis=-1, keepdims=True)
        p = jnp.exp(s)
        p = p * pl.reciprocal(jnp.sum(p, axis=-1, keepdims=True), approx=True)

        # out_h[c, i] = sum_j v[c, j] * p[i, j]   (rhs-transposed matmul, MXU-native)
        out_h = jax.lax.dot_general(v_b, p.astype(jnp.bfloat16),
                                    (((1,), (1,)), ((), ())),
                                    preferred_element_type=jnp.float32)  # (hd, HWq)
        head_outs.append(out_h)

    out_all = head_outs[0] if n_head == 1 else jnp.concatenate(head_outs, axis=0)  # (C, HWq)

    # ---- single all-head output projection + bias + residual ----
    y = jnp.dot(wo_ref[...].astype(jnp.bfloat16), out_all.astype(jnp.bfloat16),
                preferred_element_type=jnp.float32)                      # (C, HWq)
    o_ref[0] = (xq + bo_ref[...] + y).astype(o_ref.dtype)


def self_attention_forward(x_nchw, p, n_head, groups):
    B, C, H, W = x_nchw.shape
    assert C % n_head == 0 and C % groups == 0
    hd = C // n_head
    HW = H * W

    # Query-block split of the spatial (lane) axis: second parallel grid axis so a v7x chip's
    # 2 TensorCores both get work even at B == 1, and the live (HWq, HW) slab is halved.
    HWq = 128 if (HW % 128 == 0 and HW > 128) else HW
    n_qb = HW // HWq

    x_tok = x_nchw.reshape(B, C, HW)        # NCHW already has HW contiguous -> free reshape

    # qkv conv weight (3C, C, 1, 1): per-head channel order is [q(hd), k(hd), v(hd)]
    # (matches .view + chunk in the PyTorch forward). Stack Q rows of ALL heads into one
    # (C, C) matrix and K,V rows of ALL heads into one (2C, C) matrix.
    w_qkv = p["w_qkv"][:, :, 0, 0].astype(jnp.float32)          # (3C, C)
    w_r = w_qkv.reshape(n_head, 3, hd, C)
    w_q = w_r[:, 0].reshape(C, C)                               # head-major Q rows
    w_kv = w_r[:, 1:3].reshape(2 * C, C)                        # per head: k rows then v rows
    w_out = p["w_out"][:, :, 0, 0].astype(jnp.float32)          # (C, C)

    gamma = p["gn_g"].reshape(C, 1).astype(jnp.float32)
    beta = p["gn_b"].reshape(C, 1).astype(jnp.float32)
    bo = p["b_out"].reshape(C, 1).astype(jnp.float32)

    # block-diagonal group-averaging matrix, built ONCE here (stays VMEM-resident in the
    # kernel via its constant index_map instead of being rebuilt from iota every grid step)
    cg = C // groups
    gid = jnp.arange(C) // cg
    avg = (gid[:, None] == gid[None, :]).astype(jnp.float32) / cg   # (C, C)

    kernel = functools.partial(_self_attention_kernel, n_head=n_head, channel=C)

    out = pl.pallas_call(
        kernel,
        out_shape=jax.ShapeDtypeStruct((B, C, HW), x_nchw.dtype),
        grid=(B, n_qb),
        in_specs=[
            pl.BlockSpec((1, C, HW), lambda b, qb: (b, 0, 0)),     # x, full spatial (stats/K/V)
            pl.BlockSpec((1, C, HWq), lambda b, qb: (b, 0, qb)),   # x, query block (Q/residual)
            pl.BlockSpec((C, C), lambda b, qb: (0, 0)),            # group-averaging matrix
            pl.BlockSpec((C, 1), lambda b, qb: (0, 0)),            # gamma
            pl.BlockSpec((C, 1), lambda b, qb: (0, 0)),            # beta
            pl.BlockSpec((C, C), lambda b, qb: (0, 0)),            # Wq  (all heads)
            pl.BlockSpec((2 * C, C), lambda b, qb: (0, 0)),        # Wk;Wv (all heads)
            pl.BlockSpec((C, C), lambda b, qb: (0, 0)),            # Wout
            pl.BlockSpec((C, 1), lambda b, qb: (0, 0)),            # out bias
        ],
        out_specs=pl.BlockSpec((1, C, HWq), lambda b, qb: (b, 0, qb)),
        compiler_params=pltpu.CompilerParams(
            dimension_semantics=("parallel", "parallel")),
    )(x_tok, x_tok, avg, gamma, beta, w_q, w_kv, w_out, bo)

    return out.reshape(B, C, H, W)


# ---------------- pure-JAX reference (mirrors PyTorch NCHW semantics) ----------------

def _group_norm_ref(x, gamma, beta, groups, eps=EPS):
    B, C, H, W = x.shape
    xg = x.reshape(B, groups, -1)
    m = xg.mean(axis=-1, keepdims=True)
    v = ((xg - m) ** 2).mean(axis=-1, keepdims=True)
    xn = ((xg - m) / jnp.sqrt(v + eps)).reshape(B, C, H, W)
    return xn * gamma[None, :, None, None] + beta[None, :, None, None]


def self_attention_ref(x, p, n_head, groups):
    B, C, H, W = x.shape
    hd = C // n_head
    xn = _group_norm_ref(x, p["gn_g"], p["gn_b"], groups)
    qkv = jnp.einsum('oi,bihw->bohw', p["w_qkv"][:, :, 0, 0], xn)
    qkv = qkv.reshape(B, n_head, hd * 3, H, W)
    q, k, v = jnp.split(qkv, 3, axis=2)
    attn = jnp.einsum('bnchw,bncyx->bnhwyx', q, k) / math.sqrt(C)
    attn = attn.reshape(B, n_head, H, W, H * W)
    attn = jax.nn.softmax(attn, axis=-1)
    attn = attn.reshape(B, n_head, H, W, H, W)
    out = jnp.einsum('bnhwyx,bncyx->bnchw', attn, v)
    out = out.reshape(B, C, H, W)
    out = jnp.einsum('oi,bihw->bohw', p["w_out"][:, :, 0, 0], out) \
        + p["b_out"][None, :, None, None]
    return out + x


# ---------------- main ----------------

if __name__ == "__main__":
    B, C, H, W = 2, 32, 16, 16
    n_head = 2      # exercises the multi-head path
    groups = 8      # norm_groups (must divide C)

    ks = jax.random.split(jax.random.PRNGKey(0), 6)
    p = {
        "gn_g": 1.0 + 0.1 * jax.random.normal(ks[0], (C,), jnp.float32),
        "gn_b": 0.1 * jax.random.normal(ks[1], (C,), jnp.float32),
        "w_qkv": (1.0 / math.sqrt(C)) * jax.random.normal(ks[2], (3 * C, C, 1, 1), jnp.float32),
        "w_out": (1.0 / math.sqrt(C)) * jax.random.normal(ks[3], (C, C, 1, 1), jnp.float32),
        "b_out": 0.1 * jax.random.normal(ks[4], (C,), jnp.float32),
    }
    x = jax.random.normal(ks[5], (B, C, H, W), jnp.float32)   # NCHW like PyTorch

    out = jax.block_until_ready(self_attention_forward(x, p, n_head, groups))
    ref = self_attention_ref(x, p, n_head, groups)

    assert out.shape == (B, C, H, W)
    err = float(jnp.max(jnp.abs(out - ref)))
    # bf16 MXU operands with f32 accumulation: tolerance widened from 2e-3 to 2e-2 per review.
    assert jnp.allclose(out, ref, rtol=2e-2, atol=2e-2), err
    print("KERNEL_OK")
</pallas_src>

<mosaic_0001>
module attributes {stable_mosaic.version = 11 : i64} {
  func.func @_self_attention_kernel(%arg0: i32, %arg1: i32, %arg2: memref<1x32x256xf32, #tpu.memory_space<vmem>>, %arg3: memref<1x32x128xf32, #tpu.memory_space<vmem>>, %arg4: memref<32x32xf32, #tpu.memory_space<vmem>>, %arg5: memref<32x1xf32, #tpu.memory_space<vmem>>, %arg6: memref<32x1xf32, #tpu.memory_space<vmem>>, %arg7: memref<32x32xf32, #tpu.memory_space<vmem>>, %arg8: memref<64x32xf32, #tpu.memory_space<vmem>>, %arg9: memref<32x32xf32, #tpu.memory_space<vmem>>, %arg10: memref<32x1xf32, #tpu.memory_space<vmem>>, %arg11: memref<1x32x128xf32, #tpu.memory_space<vmem>>) attributes {dimension_semantics = [#tpu.dimension_semantics<parallel>, #tpu.dimension_semantics<parallel>], iteration_bounds = array<i64: 2, 2>, scalar_prefetch = 0 : i64, scratch_operands = 0 : i64, tpu.core_type = #tpu.core_type<tc>, window_params = [{transform_indices = @transform_0, window_bounds = array<i64: 1, 32, 256>}, {transform_indices = @transform_1, window_bounds = array<i64: 1, 32, 128>}, {pipeline_mode = #tpu.pipeline_mode<synchronous>, transform_indices = @transform_2, window_bounds = array<i64: 32, 32>}, {pipeline_mode = #tpu.pipeline_mode<synchronous>, transform_indices = @transform_3, window_bounds = array<i64: 32, 1>}, {pipeline_mode = #tpu.pipeline_mode<synchronous>, transform_indices = @transform_4, window_bounds = array<i64: 32, 1>}, {pipeline_mode = #tpu.pipeline_mode<synchronous>, transform_indices = @transform_5, window_bounds = array<i64: 32, 32>}, {pipeline_mode = #tpu.pipeline_mode<synchronous>, transform_indices = @transform_6, window_bounds = array<i64: 64, 32>}, {pipeline_mode = #tpu.pipeline_mode<synchronous>, transform_indices = @transform_7, window_bounds = array<i64: 32, 32>}, {pipeline_mode = #tpu.pipeline_mode<synchronous>, transform_indices = @transform_8, window_bounds = array<i64: 32, 1>}, {transform_indices = @transform_9, window_bounds = array<i64: 1, 32, 128>}]} {
    %c0 = arith.constant 0 : index
    %c0_0 = arith.constant 0 : index
    %c0_1 = arith.constant 0 : index
    %0 = vector.load %arg2[%c0, %c0_0, %c0_1] : memref<1x32x256xf32, #tpu.memory_space<vmem>>, vector<1x32x256xf32>
    %1 = vector.shape_cast %0 : vector<1x32x256xf32> to vector<32x256xf32>
    %c0_2 = arith.constant 0 : index
    %c0_3 = arith.constant 0 : index
    %c0_4 = arith.constant 0 : index
    %2 = vector.load %arg3[%c0_2, %c0_3, %c0_4] : memref<1x32x128xf32, #tpu.memory_space<vmem>>, vector<1x32x128xf32>
    %3 = vector.shape_cast %2 : vector<1x32x128xf32> to vector<32x128xf32>
    %cst = arith.constant dense<0.000000e+00> : vector<32xf32>
    %4 = vector.multi_reduction <add>, %1, %cst [1] : vector<32x256xf32> to vector<32xf32>
    %5 = vector.shape_cast %4 : vector<32xf32> to vector<32x1xf32>
    %cst_5 = arith.constant 3.906250e-03 : f32
    %6 = vector.broadcast %cst_5 : f32 to vector<32x1xf32>
    %7 = arith.mulf %5, %6 : vector<32x1xf32>
    %8 = arith.mulf %1, %1 : vector<32x256xf32>
    %cst_6 = arith.constant dense<0.000000e+00> : vector<32xf32>
    %9 = vector.multi_reduction <add>, %8, %cst_6 [1] : vector<32x256xf32> to vector<32xf32>
    %10 = vector.shape_cast %9 : vector<32xf32> to vector<32x1xf32>
    %cst_7 = arith.constant 3.906250e-03 : f32
    %11 = vector.broadcast %cst_7 : f32 to vector<32x1xf32>
    %12 = arith.mulf %10, %11 : vector<32x1xf32>
    %13 = tpu.iota {dimensions = array<i32: 1>} : vector<32x2xi32>
    %c0_i32 = arith.constant 0 : i32
    %14 = vector.broadcast %c0_i32 : i32 to vector<32x2xi32>
    %15 = arith.cmpi eq, %13, %14 : vector<32x2xi32>
    %16 = vector.shape_cast %7 : vector<32x1xf32> to vector<32x1xf32>
    %17 = vector.broadcast %16 : vector<32x1xf32> to vector<32x2xf32>
    %18 = vector.shape_cast %12 : vector<32x1xf32> to vector<32x1xf32>
    %19 = vector.broadcast %18 : vector<32x1xf32> to vector<32x2xf32>
    %20 = arith.select %15, %17, %19 : vector<32x2xi1>, vector<32x2xf32>
    %c0_8 = arith.constant 0 : index
    %c0_9 = arith.constant 0 : index
    %21 = vector.load %arg4[%c0_8, %c0_9] : memref<32x32xf32, #tpu.memory_space<vmem>>, vector<32x32xf32>
    %cst_10 = arith.constant dense<0.000000e+00> : vector<32x2xf32>
    %22 = tpu.matmul %21, %20, %cst_10 {dimension_numbers = #tpu.dot_dimension_numbers<[1], [0], [0], [1], [0, 0, 1, 1], [], []>} : vector<32x32xf32>, vector<32x2xf32>, vector<32x2xf32> -> vector<32x2xf32>
    %23 = vector.extract_strided_slice %22 {offsets = [0, 0], sizes = [32, 1], strides = [1, 1]} : vector<32x2xf32> to vector<32x1xf32>
    %24 = vector.extract_strided_slice %22 {offsets = [0, 1], sizes = [32, 1], strides = [1, 1]} : vector<32x2xf32> to vector<32x1xf32>
    %25 = arith.mulf %23, %23 : vector<32x1xf32>
    %26 = arith.subf %24, %25 : vector<32x1xf32>
    %cst_11 = arith.constant 9.99999974E-6 : f32
    %27 = vector.broadcast %cst_11 : f32 to vector<32x1xf32>
    %28 = arith.addf %26, %27 : vector<32x1xf32>
    %29 = math.rsqrt %28 : vector<32x1xf32>
    %c0_12 = arith.constant 0 : index
    %c0_13 = arith.constant 0 : index
    %30 = vector.load %arg5[%c0_12, %c0_13] : memref<32x1xf32, #tpu.memory_space<vmem>>, vector<32x1xf32>
    %31 = arith.mulf %29, %30 : vector<32x1xf32>
    %c0_14 = arith.constant 0 : index
    %c0_15 = arith.constant 0 : index
    %32 = vector.load %arg6[%c0_14, %c0_15] : memref<32x1xf32, #tpu.memory_space<vmem>>, vector<32x1xf32>
    %33 = arith.mulf %23, %31 : vector<32x1xf32>
    %34 = arith.subf %32, %33 : vector<32x1xf32>
    %35 = vector.broadcast %31 : vector<32x1xf32> to vector<32x256xf32>
    %36 = arith.mulf %1, %35 : vector<32x256xf32>
    %37 = vector.broadcast %34 : vector<32x1xf32> to vector<32x256xf32>
    %38 = arith.addf %36, %37 : vector<32x256xf32>
    %39 = vector.broadcast %31 : vector<32x1xf32> to vector<32x128xf32>
    %40 = arith.mulf %3, %39 : vector<32x128xf32>
    %41 = vector.broadcast %34 : vector<32x1xf32> to vector<32x128xf32>
    %42 = arith.addf %40, %41 : vector<32x128xf32>
    %c0_16 = arith.constant 0 : index
    %c0_17 = arith.constant 0 : index
    %43 = vector.load %arg8[%c0_16, %c0_17] : memref<64x32xf32, #tpu.memory_space<vmem>>, vector<64x32xf32>
    %cst_18 = arith.constant dense<0.000000e+00> : vector<64x256xf32>
    %44 = tpu.matmul %43, %38, %cst_18 {dimension_numbers = #tpu.dot_dimension_numbers<[1], [0], [0], [1], [0, 0, 1, 1], [], []>} : vector<64x32xf32>, vector<32x256xf32>, vector<64x256xf32> -> vector<64x256xf32>
    %c0_19 = arith.constant 0 : index
    %c0_20 = arith.constant 0 : index
    %45 = vector.load %arg7[%c0_19, %c0_20] : memref<32x32xf32, #tpu.memory_space<vmem>>, vector<32x32xf32>
    %cst_21 = arith.constant dense<0.000000e+00> : vector<32x128xf32>
    %46 = tpu.matmul %45, %42, %cst_21 {dimension_numbers = #tpu.dot_dimension_numbers<[1], [0], [0], [1], [0, 0, 1, 1], [], []>} : vector<32x32xf32>, vector<32x128xf32>, vector<32x128xf32> -> vector<32x128xf32>
    %47 = vector.extract_strided_slice %46 {offsets = [0, 0], sizes = [16, 128], strides = [1, 1]} : vector<32x128xf32> to vector<16x128xf32>
    %48 = vector.extract_strided_slice %44 {offsets = [0, 0], sizes = [16, 256], strides = [1, 1]} : vector<64x256xf32> to vector<16x256xf32>
    %49 = vector.extract_strided_slice %44 {offsets = [16, 0], sizes = [16, 256], strides = [1, 1]} : vector<64x256xf32> to vector<16x256xf32>
    %50 = tpu.transpose %47, [1, 0] : vector<16x128xf32> -> vector<128x16xf32>
    %cst_22 = arith.constant 0.176776692 : f32
    %51 = vector.broadcast %cst_22 : f32 to vector<128x16xf32>
    %52 = arith.mulf %50, %51 : vector<128x16xf32>
    %53 = arith.truncf %52 : vector<128x16xf32> to vector<128x16xbf16>
    %54 = arith.truncf %48 : vector<16x256xf32> to vector<16x256xbf16>
    %55 = arith.truncf %49 : vector<16x256xf32> to vector<16x256xbf16>
    %cst_23 = arith.constant dense<0.000000e+00> : vector<128x256xf32>
    %56 = tpu.matmul %53, %54, %cst_23 {dimension_numbers = #tpu.dot_dimension_numbers<[1], [0], [0], [1], [0, 0, 1, 1], [], []>} : vector<128x16xbf16>, vector<16x256xbf16>, vector<128x256xf32> -> vector<128x256xf32>
    %cst_24 = arith.constant dense<0xFF800000> : vector<128xf32>
    %57 = vector.multi_reduction <maximumf>, %56, %cst_24 [1] : vector<128x256xf32> to vector<128xf32>
    %58 = vector.shape_cast %57 : vector<128xf32> to vector<128x1xf32>
    %59 = vector.broadcast %58 : vector<128x1xf32> to vector<128x256xf32>
    %60 = arith.subf %56, %59 : vector<128x256xf32>
    %61 = math.exp %60 : vector<128x256xf32>
    %cst_25 = arith.constant dense<0.000000e+00> : vector<128xf32>
    %62 = vector.multi_reduction <add>, %61, %cst_25 [1] : vector<128x256xf32> to vector<128xf32>
    %63 = vector.shape_cast %62 : vector<128xf32> to vector<128x1xf32>
    %64 = tpu.reciprocal %63 {approx = true} : vector<128x1xf32> -> vector<128x1xf32>
    %65 = vector.broadcast %64 : vector<128x1xf32> to vector<128x256xf32>
    %66 = arith.mulf %61, %65 : vector<128x256xf32>
    %67 = arith.truncf %66 : vector<128x256xf32> to vector<128x256xbf16>
    %cst_26 = arith.constant dense<0.000000e+00> : vector<16x128xf32>
    %68 = tpu.matmul %55, %67, %cst_26 {dimension_numbers = #tpu.dot_dimension_numbers<[1], [1], [0], [0], [0, 0, 1, 0], [], []>} : vector<16x256xbf16>, vector<128x256xbf16>, vector<16x128xf32> -> vector<16x128xf32>
    %69 = vector.extract_strided_slice %46 {offsets = [16, 0], sizes = [16, 128], strides = [1, 1]} : vector<32x128xf32> to vector<16x128xf32>
    %70 = vector.extract_strided_slice %44 {offsets = [32, 0], sizes = [16, 256], strides = [1, 1]} : vector<64x256xf32> to vector<16x256xf32>
    %71 = vector.extract_strided_slice %44 {offsets = [48, 0], sizes = [16, 256], strides = [1, 1]} : vector<64x256xf32> to vector<16x256xf32>
    %72 = tpu.transpose %69, [1, 0] : vector<16x128xf32> -> vector<128x16xf32>
    %cst_27 = arith.constant 0.176776692 : f32
    %73 = vector.broadcast %cst_27 : f32 to vector<128x16xf32>
    %74 = arith.mulf %72, %73 : vector<128x16xf32>
    %75 = arith.truncf %74 : vector<128x16xf32> to vector<128x16xbf16>
    %76 = arith.truncf %70 : vector<16x256xf32> to vector<16x256xbf16>
    %77 = arith.truncf %71 : vector<16x256xf32> to vector<16x256xbf16>
    %cst_28 = arith.constant dense<0.000000e+00> : vector<128x256xf32>
    %78 = tpu.matmul %75, %76, %cst_28 {dimension_numbers = #tpu.dot_dimension_numbers<[1], [0], [0], [1], [0, 0, 1, 1], [], []>} : vector<128x16xbf16>, vector<16x256xbf16>, vector<128x256xf32> -> vector<128x256xf32>
    %cst_29 = arith.constant dense<0xFF800000> : vector<128xf32>
    %79 = vector.multi_reduction <maximumf>, %78, %cst_29 [1] : vector<128x256xf32> to vector<128xf32>
    %80 = vector.shape_cast %79 : vector<128xf32> to vector<128x1xf32>
    %81 = vector.broadcast %80 : vector<128x1xf32> to vector<128x256xf32>
    %82 = arith.subf %78, %81 : vector<128x256xf32>
    %83 = math.exp %82 : vector<128x256xf32>
    %cst_30 = arith.constant dense<0.000000e+00> : vector<128xf32>
    %84 = vector.multi_reduction <add>, %83, %cst_30 [1] : vector<128x256xf32> to vector<128xf32>
    %85 = vector.shape_cast %84 : vector<128xf32> to vector<128x1xf32>
    %86 = tpu.reciprocal %85 {approx = true} : vector<128x1xf32> -> vector<128x1xf32>
    %87 = vector.broadcast %86 : vector<128x1xf32> to vector<128x256xf32>
    %88 = arith.mulf %83, %87 : vector<128x256xf32>
    %89 = arith.truncf %88 : vector<128x256xf32> to vector<128x256xbf16>
    %cst_31 = arith.constant dense<0.000000e+00> : vector<16x128xf32>
    %90 = tpu.matmul %77, %89, %cst_31 {dimension_numbers = #tpu.dot_dimension_numbers<[1], [1], [0], [0], [0, 0, 1, 0], [], []>} : vector<16x256xbf16>, vector<128x256xbf16>, vector<16x128xf32> -> vector<16x128xf32>
    %91 = tpu.concatenate %68, %90 in 0 : vector<16x128xf32>, vector<16x128xf32> -> vector<32x128xf32>
    %c0_32 = arith.constant 0 : index
    %c0_33 = arith.constant 0 : index
    %92 = vector.load %arg9[%c0_32, %c0_33] : memref<32x32xf32, #tpu.memory_space<vmem>>, vector<32x32xf32>
    %93 = arith.truncf %92 : vector<32x32xf32> to vector<32x32xbf16>
    %94 = arith.truncf %91 : vector<32x128xf32> to vector<32x128xbf16>
    %cst_34 = arith.constant dense<0.000000e+00> : vector<32x128xf32>
    %95 = tpu.matmul %93, %94, %cst_34 {dimension_numbers = #tpu.dot_dimension_numbers<[1], [0], [0], [1], [0, 0, 1, 1], [], []>} : vector<32x32xbf16>, vector<32x128xbf16>, vector<32x128xf32> -> vector<32x128xf32>
    %c0_35 = arith.constant 0 : index
    %c0_36 = arith.constant 0 : index
    %96 = vector.load %arg10[%c0_35, %c0_36] : memref<32x1xf32, #tpu.memory_space<vmem>>, vector<32x1xf32>
    %97 = vector.broadcast %96 : vector<32x1xf32> to vector<32x128xf32>
    %98 = arith.addf %3, %97 : vector<32x128xf32>
    %99 = arith.addf %98, %95 : vector<32x128xf32>
    %c0_37 = arith.constant 0 : index
    %c0_38 = arith.constant 0 : index
    %c0_39 = arith.constant 0 : index
    %100 = vector.load %arg11[%c0_37, %c0_38, %c0_39] : memref<1x32x128xf32, #tpu.memory_space<vmem>>, vector<1x32x128xf32>
    %101 = vector.shape_cast %100 : vector<1x32x128xf32> to vector<32x128xf32>
    %102 = vector.shape_cast %99 : vector<32x128xf32> to vector<1x32x128xf32>
    tpu.vector_store %arg11[%c0_37, %c0_38, %c0_39], %102 {strides = array<i32>} : memref<1x32x128xf32, #tpu.memory_space<vmem>>, vector<1x32x128xf32>,
    return
  }
  func.func @transform_0(%arg0: i32, %arg1: i32) -> (i32, i32, i32) {
    %c0_i32 = arith.constant 0 : i32
    %c0_i32_0 = arith.constant 0 : i32
    %c0_i32_1 = arith.constant 0 : i32
    return %arg0, %c0_i32, %c0_i32_0 : i32, i32, i32
  }
  func.func @transform_1(%arg0: i32, %arg1: i32) -> (i32, i32, i32) {
    %c0_i32 = arith.constant 0 : i32
    %c0_i32_0 = arith.constant 0 : i32
    return %arg0, %c0_i32, %arg1 : i32, i32, i32
  }
  func.func @transform_2(%arg0: i32, %arg1: i32) -> (i32, i32) {
    %c0_i32 = arith.constant 0 : i32
    %c0_i32_0 = arith.constant 0 : i32
    %c0_i32_1 = arith.constant 0 : i32
    return %c0_i32, %c0_i32_0 : i32, i32
  }
  func.func @transform_3(%arg0: i32, %arg1: i32) -> (i32, i32) {
    %c0_i32 = arith.constant 0 : i32
    %c0_i32_0 = arith.constant 0 : i32
    %c0_i32_1 = arith.constant 0 : i32
    return %c0_i32, %c0_i32_0 : i32, i32
  }
  func.func @transform_4(%arg0: i32, %arg1: i32) -> (i32, i32) {
    %c0_i32 = arith.constant 0 : i32
    %c0_i32_0 = arith.constant 0 : i32
    %c0_i32_1 = arith.constant 0 : i32
    return %c0_i32, %c0_i32_0 : i32, i32
  }
  func.func @transform_5(%arg0: i32, %arg1: i32) -> (i32, i32) {
    %c0_i32 = arith.constant 0 : i32
    %c0_i32_0 = arith.constant 0 : i32
    %c0_i32_1 = arith.constant 0 : i32
    return %c0_i32, %c0_i32_0 : i32, i32
  }
  func.func @transform_6(%arg0: i32, %arg1: i32) -> (i32, i32) {
    %c0_i32 = arith.constant 0 : i32
    %c0_i32_0 = arith.constant 0 : i32
    %c0_i32_1 = arith.constant 0 : i32
    return %c0_i32, %c0_i32_0 : i32, i32
  }
  func.func @transform_7(%arg0: i32, %arg1: i32) -> (i32, i32) {
    %c0_i32 = arith.constant 0 : i32
    %c0_i32_0 = arith.constant 0 : i32
    %c0_i32_1 = arith.constant 0 : i32
    return %c0_i32, %c0_i32_0 : i32, i32
  }
  func.func @transform_8(%arg0: i32, %arg1: i32) -> (i32, i32) {
    %c0_i32 = arith.constant 0 : i32
    %c0_i32_0 = arith.constant 0 : i32
    %c0_i32_1 = arith.constant 0 : i32
    return %c0_i32, %c0_i32_0 : i32, i32
  }
  func.func @transform_9(%arg0: i32, %arg1: i32) -> (i32, i32, i32) {
    %c0_i32 = arith.constant 0 : i32
    %c0_i32_0 = arith.constant 0 : i32
    return %arg0, %c0_i32, %arg1 : i32, i32, i32
  }
}

</mosaic_0001>

<llo_original>
// kernel: tpu_custom_call.1
$region0: #{tpu_custom_call.1}
  #allocation0 [shape = 'u32[]', space=smem, size = 0x4, offset = 0x4, fixed_abs, tag = 'smem constant byte address 0x4 - core index']
  #allocation1 [shape = 'u32[144,128]{1,0:T(1,128)}', space=vmem, size = 0x12000, scoped, tag = 'internal scratch']
  %s0 = inlined_call_operand.vmem [shape: f32[2,32,256], index: 0, kind: input, shape index: {}]
  %s1 = inlined_call_operand.hbm [shape: f32[2,32,256], index: 1, kind: input, shape index: {}]
  %s2 = inlined_call_operand.vmem [shape: f32[32,32], index: 2, kind: input, shape index: {}]
  %s3 = inlined_call_operand.vmem [shape: f32[32,1], index: 3, kind: input, shape index: {}]
  %s4 = inlined_call_operand.vmem [shape: f32[32,1], index: 4, kind: input, shape index: {}]
  %s5 = inlined_call_operand.hbm [shape: f32[32,32], index: 5, kind: input, shape index: {}]
  %s6 = inlined_call_operand.vmem [shape: f32[64,32], index: 6, kind: input, shape index: {}]
  %s7 = inlined_call_operand.hbm [shape: f32[32,32], index: 7, kind: input, shape index: {}]
  %s8 = inlined_call_operand.vmem [shape: f32[32,1], index: 8, kind: input, shape index: {}]
  %s9 = inlined_call_operand.hbm [shape: f32[2,32,256], index: 9, kind: output, shape index: {}]
  %s10 = sld [smem:[#allocation0]]
  $region81: #{tpu_custom_call.1} parent=0
    _
  %s12 = ssub.s32 1, %s10
  %s13 = scalar_select 0, %s12, %s10
  $region1: #{tpu_custom_call.1} parent=0
    #allocation2 [shape = 'u8[32768]{0}', space=vmem, size = 0x8000, scoped, tag = 'input window, operand 1']
    #allocation3 [shape = 's32[2]{0}', space=sflag, size = 0x8, scoped, tag = 'scoped memory for tpu_custom_call.1']
    #allocation4 [shape = 's32[2]{0}', space=sflag, size = 0x8, scoped, tag = 'scoped memory for tpu_custom_call.1']
    #allocation5 [shape = 'u8[16384]{0}', space=vmem, size = 0x4000, scoped, tag = 'input window, operand 5, single buffered']
    #allocation6 [shape = 's32[1]{0}', space=sflag, size = 0x4, scoped, tag = 'scoped memory for tpu_custom_call.1']
    #allocation7 [shape = 'u8[16384]{0}', space=vmem, size = 0x4000, scoped, tag = 'input window, operand 7, single buffered']
    #allocation8 [shape = 'u8[32768]{0}', space=vmem, size = 0x8000, scoped, tag = 'output window, operand 0']
    %14 = vsyncpa [#allocation3], 0
    %s15 = scalar_lea.sflag [#allocation3], 1
    %16 = vsyncpa %s15, 0
    %17 = vsyncpa [#allocation6], 0
    %18 = vsyncpa [#allocation4], 0
    %s19 = scalar_lea.sflag [#allocation4], 1
    %20 = vsyncpa %s19, 0
    loop: start=0, step=1, limit=6
    $region2: #{tpu_custom_call.1} parent=1 // loop_pre_header
      _
    $region3: #{tpu_custom_call.1} parent=1 // loop_header
      %s22 = sphi 0, %s26
      %p23 = scmp.ge.s32.totalorder %s22, 6
      %s29 = sphi 0, %s41
      %s30 = sphi 0, %s37
      %s31 = sphi 0, %s29
      %s32 = sphi 0, %s30
      %s33 = sphi 0, %s31
      %s34 = sphi 0, %s32
      %s44 = sphi 0, %s46
      %s47 = sphi 0, %s44
      %s48 = sphi 0, %s47
      %s64 = sphi 0, %s48
      %s72 = sphi 0, %s74
      %s75 = sphi 0, %s72
      %s76 = sphi 0, %s75
      %s92 = sphi 0, %s76
      %s96 = sphi 0, %s96
      %s98 = sphi 0, %s96
      %s99 = sphi 0, %s98
      %s113 = sphi 0, %s99
      %s117 = sphi 0, %s117
      %s119 = sphi 0, %s117
      %s120 = sphi 0, %s119
      %s134 = sphi 0, %s120
      %s138 = sphi 0, %s138
      %s140 = sphi 0, %s138
      %s141 = sphi 0, %s140
      %s155 = sphi 0, %s141
      %s159 = sphi 0, %s159
      %s161 = sphi 0, %s159
      %s162 = sphi 0, %s161
      %s176 = sphi 0, %s162
      %s180 = sphi 0, %s180
      %s182 = sphi 0, %s180
      %s183 = sphi 0, %s182
      %s197 = sphi 0, %s183
      %s201 = sphi 0, %s201
      %s203 = sphi 0, %s201
      %s204 = sphi 0, %s203
      %s218 = sphi 0, %s204
      %s222 = sphi 0, %s222
      %s224 = sphi 0, %s222
      %s225 = sphi 0, %s224
      %s239 = sphi 0, %s225
      %s247 = sphi 0, %s249
      %s250 = sphi 0, %s247
      %s251 = sphi 0, %s250
      %s267 = sphi 0, %s251
    $region4: #{tpu_custom_call.1} parent=1 // loop_header_branch
      %25 = sbr.rel (%p23) target = $region8
    $region5: #{tpu_custom_call.1} parent=1 // loop_body
      %s27 = ssub.s32 %s22, 1
      %s28 = ssub.s32 %s22, 2
      %s35 = sadd.s32 1, %s30
      %p36 = scmp.ge.s32.totalorder %s35, 2
      %s37 = scalar_select %p36, 0, %s35
      %s38 = sadd.s32 1, %s29
      %s39 = scalar_select %p36, %s38, %s29
      %p40 = scmp.ge.s32.totalorder %s39, 2
      %s41 = scalar_select %p40, 0, %s39
      %s42 = ssub.s32 %s29, %s41
      %p43 = scmp.eq.s32.totalorder %s42, 0
      %s45 = sadd.s32 %s44, 1
      %s46 = scalar_select %p43, %s44, %s45
      %p49 = pneg %p43
      %p50 = scmp.eq.s32.totalorder %s22, 3
      %p51 = por %p49, %p50
      %p52 = scmp.ne.s32.totalorder %s44, %s47
      %p53 = scmp.eq.s32.totalorder %s22, 0
      %p54 = por %p52, %p53
      %p55 = scmp.ne.s32.totalorder %s44, %s47
      %p56 = scmp.eq.s32.totalorder %s27, 3
      %p57 = por %p55, %p56
      %p58 = scmp.ne.s32.totalorder %s47, %s48
      %p59 = scmp.eq.s32.totalorder %s27, 0
      %p60 = por %p58, %p59
      %p61 = scmp.ne.s32.totalorder %s47, %s48
      %p62 = scmp.eq.s32.totalorder %s28, 3
      %p63 = por %p61, %p62
      %p65 = scmp.ne.s32.totalorder %s48, %s64
      %p66 = scmp.eq.s32.totalorder %s28, 0
      %p67 = por %p65, %p66
      %s68 = ssub.s32 %s29, %s41
      %s69 = ssub.s32 %s30, %s37
      %s70 = sor.u32 %s68, %s69
      %p71 = scmp.eq.s32.totalorder %s70, 0
      %s73 = sadd.s32 %s72, 1
      %s74 = scalar_select %p71, %s72, %s73
      %p77 = pneg %p71
      %p78 = scmp.eq.s32.totalorder %s22, 3
      %p79 = por %p77, %p78
      %p80 = scmp.ne.s32.totalorder %s72, %s75
      %p81 = scmp.eq.s32.totalorder %s22, 0
      %p82 = por %p80, %p81
      %p83 = scmp.ne.s32.totalorder %s72, %s75
      %p84 = scmp.eq.s32.totalorder %s27, 3
      %p85 = por %p83, %p84
      %p86 = scmp.ne.s32.totalorder %s75, %s76
      %p87 = scmp.eq.s32.totalorder %s27, 0
      %p88 = por %p86, %p87
      %p89 = scmp.ne.s32.totalorder %s75, %s76
      %p90 = scmp.eq.s32.totalorder %s28, 3
      %p91 = por %p89, %p90
      %p93 = scmp.ne.s32.totalorder %s76, %s92
      %p94 = scmp.eq.s32.totalorder %s28, 0
      %p95 = por %p93, %p94
      %s97 = sadd.s32 %s96, 1
      %p100 = scmp.eq.s32.totalorder %s22, 3
      %p101 = scmp.ne.s32.totalorder %s96, %s98
      %p102 = scmp.eq.s32.totalorder %s22, 0
      %p103 = por %p101, %p102
      %p104 = scmp.ne.s32.totalorder %s96, %s98
      %p105 = scmp.eq.s32.totalorder %s27, 3
      %p106 = por %p104, %p105
      %p107 = scmp.ne.s32.totalorder %s98, %s99
      %p108 = scmp.eq.s32.totalorder %s27, 0
      %p109 = por %p107, %p108
      %p110 = scmp.ne.s32.totalorder %s98, %s99
      %p111 = scmp.eq.s32.totalorder %s28, 3
      %p112 = por %p110, %p111
      %p114 = scmp.ne.s32.totalorder %s99, %s113
      %p115 = scmp.eq.s32.totalorder %s28, 0
      %p116 = por %p114, %p115
      %s118 = sadd.s32 %s117, 1
      %p121 = scmp.eq.s32.totalorder %s22, 3
      %p122 = scmp.ne.s32.totalorder %s117, %s119
      %p123 = scmp.eq.s32.totalorder %s22, 0
      %p124 = por %p122, %p123
      %p125 = scmp.ne.s32.totalorder %s117, %s119
      %p126 = scmp.eq.s32.totalorder %s27, 3
      %p127 = por %p125, %p126
      %p128 = scmp.ne.s32.totalorder %s119, %s120
      %p129 = scmp.eq.s32.totalorder %s27, 0
      %p130 = por %p128, %p129
      %p131 = scmp.ne.s32.totalorder %s119, %s120
      %p132 = scmp.eq.s32.totalorder %s28, 3
      %p133 = por %p131, %p132
      %p135 = scmp.ne.s32.totalorder %s120, %s134
      %p136 = scmp.eq.s32.totalorder %s28, 0
      %p137 = por %p135, %p136
      %s139 = sadd.s32 %s138, 1
      %p142 = scmp.eq.s32.totalorder %s22, 3
      %p143 = scmp.ne.s32.totalorder %s138, %s140
      %p144 = scmp.eq.s32.totalorder %s22, 0
      %p145 = por %p143, %p144
      %p146 = scmp.ne.s32.totalorder %s138, %s140
      %p147 = scmp.eq.s32.totalorder %s27, 3
      %p148 = por %p146, %p147
      %p149 = scmp.ne.s32.totalorder %s140, %s141
      %p150 = scmp.eq.s32.totalorder %s27, 0
      %p151 = por %p149, %p150
      %p152 = scmp.ne.s32.totalorder %s140, %s141
      %p153 = scmp.eq.s32.totalorder %s28, 3
      %p154 = por %p152, %p153
      %p156 = scmp.ne.s32.totalorder %s141, %s155
      %p157 = scmp.eq.s32.totalorder %s28, 0
      %p158 = por %p156, %p157
      %s160 = sadd.s32 %s159, 1
      %p163 = scmp.eq.s32.totalorder %s22, 3
      %p164 = scmp.ne.s32.totalorder %s159, %s161
      %p165 = scmp.eq.s32.totalorder %s22, 0
      %p166 = por %p164, %p165
      %p167 = scmp.ne.s32.totalorder %s159, %s161
      %p168 = scmp.eq.s32.totalorder %s27, 3
      %p169 = por %p167, %p168
      %p170 = scmp.ne.s32.totalorder %s161, %s162
      %p171 = scmp.eq.s32.totalorder %s27, 0
      %p172 = por %p170, %p171
      %p173 = scmp.ne.s32.totalorder %s161, %s162
      %p174 = scmp.eq.s32.totalorder %s28, 3
      %p175 = por %p173, %p174
      %p177 = scmp.ne.s32.totalorder %s162, %s176
      %p178 = scmp.eq.s32.totalorder %s28, 0
      %p179 = por %p177, %p178
      %s181 = sadd.s32 %s180, 1
      %p184 = scmp.eq.s32.totalorder %s22, 3
      %p185 = scmp.ne.s32.totalorder %s180, %s182
      %p186 = scmp.eq.s32.totalorder %s22, 0
      %p187 = por %p185, %p186
      %p188 = scmp.ne.s32.totalorder %s180, %s182
      %p189 = scmp.eq.s32.totalorder %s27, 3
      %p190 = por %p188, %p189
      %p191 = scmp.ne.s32.totalorder %s182, %s183
      %p192 = scmp.eq.s32.totalorder %s27, 0
      %p193 = por %p191, %p192
      %p194 = scmp.ne.s32.totalorder %s182, %s183
      %p195 = scmp.eq.s32.totalorder %s28, 3
      %p196 = por %p194, %p195
      %p198 = scmp.ne.s32.totalorder %s183, %s197
      %p199 = scmp.eq.s32.totalorder %s28, 0
      %p200 = por %p198, %p199
      %s202 = sadd.s32 %s201, 1
      %p205 = scmp.eq.s32.totalorder %s22, 3
      %p206 = scmp.ne.s32.totalorder %s201, %s203
      %p207 = scmp.eq.s32.totalorder %s22, 0
      %p208 = por %p206, %p207
      %p209 = scmp.ne.s32.totalorder %s201, %s203
      %p210 = scmp.eq.s32.totalorder %s27, 3
      %p211 = por %p209, %p210
      %p212 = scmp.ne.s32.totalorder %s203, %s204
      %p213 = scmp.eq.s32.totalorder %s27, 0
      %p214 = por %p212, %p213
      %p215 = scmp.ne.s32.totalorder %s203, %s204
      %p216 = scmp.eq.s32.totalorder %s28, 3
      %p217 = por %p215, %p216
      %p219 = scmp.ne.s32.totalorder %s204, %s218
      %p220 = scmp.eq.s32.totalorder %s28, 0
      %p221 = por %p219, %p220
      %s223 = sadd.s32 %s222, 1
      %p226 = scmp.eq.s32.totalorder %s22, 3
      %p227 = scmp.ne.s32.totalorder %s222, %s224
      %p228 = scmp.eq.s32.totalorder %s22, 0
      %p229 = por %p227, %p228
      %p230 = scmp.ne.s32.totalorder %s222, %s224
      %p231 = scmp.eq.s32.totalorder %s27, 3
      %p232 = por %p230, %p231
      %p233 = scmp.ne.s32.totalorder %s224, %s225
      %p234 = scmp.eq.s32.totalorder %s27, 0
      %p235 = por %p233, %p234
      %p236 = scmp.ne.s32.totalorder %s224, %s225
      %p237 = scmp.eq.s32.totalorder %s28, 3
      %p238 = por %p236, %p237
      %p240 = scmp.ne.s32.totalorder %s225, %s239
      %p241 = scmp.eq.s32.totalorder %s28, 0
      %p242 = por %p240, %p241
      %s243 = ssub.s32 %s29, %s41
      %s244 = ssub.s32 %s30, %s37
      %s245 = sor.u32 %s243, %s244
      %p246 = scmp.eq.s32.totalorder %s245, 0
      %s248 = sadd.s32 %s247, 1
      %s249 = scalar_select %p246, %s247, %s248
      %p252 = pneg %p246
      %p253 = scmp.eq.s32.totalorder %s22, 3
      %p254 = por %p252, %p253
      %p255 = scmp.ne.s32.totalorder %s247, %s250
      %p256 = scmp.eq.s32.totalorder %s22, 0
      %p257 = por %p255, %p256
      %p258 = scmp.ne.s32.totalorder %s247, %s250
      %p259 = scmp.eq.s32.totalorder %s27, 3
      %p260 = por %p258, %p259
      %p261 = scmp.ne.s32.totalorder %s250, %s251
      %p262 = scmp.eq.s32.totalorder %s27, 0
      %p263 = por %p261, %p262
      %p264 = scmp.ne.s32.totalorder %s250, %s251
      %p265 = scmp.eq.s32.totalorder %s28, 3
      %p266 = por %p264, %p265
      %p268 = scmp.ne.s32.totalorder %s251, %s267
      %p269 = scmp.eq.s32.totalorder %s28, 0
      %p270 = por %p268, %p269
      %p271 = scmp.le.s32.totalorder 1, %s22
      %p272 = scmp.lt.s32.totalorder %s22, 5
      %p273 = pnand %p271, %p272
      %p274 = pneg %p273
      // Predicated region
      $region9: #{tpu_custom_call.1} parent=5 // pred_check
        _
      $region10: #{tpu_custom_call.1} parent=5 // pred_check_branch
        %276 = sbr.rel (%p273) target = $region12
      $region11: #{tpu_custom_call.1} parent=5 // pred_region
        %s277 = ssub.s32 %s22, 1
        // Predicated region
        $region13: #{tpu_custom_call.1} parent=11 // pred_check
          %p278 = pneg %p109
        $region14: #{tpu_custom_call.1} parent=11 // pred_check_branch
          %280 = sbr.rel (%p278) target = $region16
        $region15: #{tpu_custom_call.1} parent=11 // pred_region
          _
        $region16: #{tpu_custom_call.1} parent=11 // pred_fallthru
          _
        // Predicated region
        $region17: #{tpu_custom_call.1} parent=11 // pred_check
          %p281 = pneg %p130
        $region18: #{tpu_custom_call.1} parent=11 // pred_check_branch
          %283 = sbr.rel (%p281) target = $region20
        $region19: #{tpu_custom_call.1} parent=11 // pred_region
          _
        $region20: #{tpu_custom_call.1} parent=11 // pred_fallthru
          _
        // Predicated region
        $region21: #{tpu_custom_call.1} parent=11 // pred_check
          %p284 = pneg %p151
        $region22: #{tpu_custom_call.1} parent=11 // pred_check_branch
          %286 = sbr.rel (%p284) target = $region24
        $region23: #{tpu_custom_call.1} parent=11 // pred_region
          _
        $region24: #{tpu_custom_call.1} parent=11 // pred_fallthru
          _
        // Predicated region
        $region25: #{tpu_custom_call.1} parent=11 // pred_check
          %p287 = pneg %p172
        $region26: #{tpu_custom_call.1} parent=11 // pred_check_branch
          %289 = sbr.rel (%p287) target = $region28
        $region27: #{tpu_custom_call.1} parent=11 // pred_region
          %s291 = ssub.s32 512, 512
          %292 = vsyncadd [#allocation6], %s291
          %s293 = sshll.u32 [#allocation5], 4
          %s294 = int_to_ptr.vmem [resolvable:$true] %s293
          %299 = dma.hbm_to_vmem [thread:$0]  %s5, 512, %s294, [#allocation6], 128, 128, 8
        $region28: #{tpu_custom_call.1} parent=11 // pred_fallthru
          _
        // Predicated region
        $region29: #{tpu_custom_call.1} parent=11 // pred_check
          %p300 = pneg %p193
        $region30: #{tpu_custom_call.1} parent=11 // pred_check_branch
          %302 = sbr.rel (%p300) target = $region32
        $region31: #{tpu_custom_call.1} parent=11 // pred_region
          _
        $region32: #{tpu_custom_call.1} parent=11 // pred_fallthru
          _
        // Predicated region
        $region33: #{tpu_custom_call.1} parent=11 // pred_check
          %p303 = pneg %p214
        $region34: #{tpu_custom_call.1} parent=11 // pred_check_branch
          %305 = sbr.rel (%p303) target = $region36
        $region35: #{tpu_custom_call.1} parent=11 // pred_region
          %s307 = ssub.s32 512, 512
          %308 = vsyncadd [#allocation6], %s307
          %s309 = sshll.u32 [#allocation7], 4
          %s310 = int_to_ptr.vmem [resolvable:$true] %s309
          %315 = dma.hbm_to_vmem [thread:$0]  %s7, 512, %s310, [#allocation6], 128, 128, 8
        $region36: #{tpu_custom_call.1} parent=11 // pred_fallthru
          _
        // Predicated region
        $region37: #{tpu_custom_call.1} parent=11 // pred_check
          %p316 = pneg %p235
        $region38: #{tpu_custom_call.1} parent=11 // pred_check_branch
          %318 = sbr.rel (%p316) target = $region40
        $region39: #{tpu_custom_call.1} parent=11 // pred_region
          _
        $region40: #{tpu_custom_call.1} parent=11 // pred_fallthru
          _
      $region12: #{tpu_custom_call.1} parent=5 // pred_fallthru
        _
      %p319 = scmp.lt.s32.totalorder %s22, 4
      // Predicated region
      $region41: #{tpu_custom_call.1} parent=5 // pred_check
        %p320 = pneg %p319
      $region42: #{tpu_custom_call.1} parent=5 // pred_check_branch
        %322 = sbr.rel (%p320) target = $region44
      $region43: #{tpu_custom_call.1} parent=5 // pred_region
        // Predicated region
        $region45: #{tpu_custom_call.1} parent=43 // pred_check
          %p323 = pneg %p54
        $region46: #{tpu_custom_call.1} parent=43 // pred_check_branch
          %325 = sbr.rel (%p323) target = $region48
        $region47: #{tpu_custom_call.1} parent=43 // pred_region
          %p326 = scmp.lt.s32.totalorder %s29, 1
          %s327 = scalar_select %p326, %s29, 1
          %s328 = smul.addr %s327, 8
          %s329 = smul.addr %s328, 8
          %s330 = scalar_lea.vmem %s0, %s329
        $region48: #{tpu_custom_call.1} parent=43 // pred_fallthru
          _
        // Predicated region
        $region49: #{tpu_custom_call.1} parent=43 // pred_check
          %p331 = pneg %p82
        $region50: #{tpu_custom_call.1} parent=43 // pred_check_branch
          %333 = sbr.rel (%p331) target = $region52
        $region51: #{tpu_custom_call.1} parent=43 // pred_region
          %s334 = sand.u32 %s72, 1
          %s335 = scalar_lea.sflag [#allocation3], %s334
          %s336 = sand.u32 %s72, 1
          %s337 = smul.addr %s336, 32
          %s338 = scalar_lea.vmem [#allocation2], %s337
          %s340 = ssub.s32 512, 512
          %341 = vsyncadd %s335, %s340
          %s342 = smul.addr %s29, 8
          %s343 = sadd.s32 %s30, %s342
          %s344 = smul.addr %s343, 128
          %s345 = scalar_lea.hbm %s1, %s344
          %s346 = sshll.u32 %s338, 4
          %s347 = int_to_ptr.vmem [resolvable:$true] %s346
          %352 = dma.hbm_to_vmem [thread:$0]  %s345, 512, %s347, %s335, 256, 128, 8
        $region52: #{tpu_custom_call.1} parent=43 // pred_fallthru
          _
      $region44: #{tpu_custom_call.1} parent=5 // pred_fallthru
        _
      %p353 = scmp.le.s32.totalorder 1, %s22
      %p354 = scmp.lt.s32.totalorder %s22, 5
      %p355 = pnand %p353, %p354
      %p356 = pneg %p355
      // Predicated region
      $region53: #{tpu_custom_call.1} parent=5 // pred_check
        _
      $region54: #{tpu_custom_call.1} parent=5 // pred_check_branch
        %358 = sbr.rel (%p355) target = $region56
      $region55: #{tpu_custom_call.1} parent=5 // pred_region
        %s359 = ssub.s32 %s22, 1
        %s360 = sand.u32 %s75, 1
        %s361 = scalar_lea.sflag [#allocation3], %s360
        %s362 = sand.u32 %s75, 1
        %s363 = smul.addr %s362, 32
        %s364 = scalar_lea.vmem [#allocation2], %s363
        // Predicated region
        $region57: #{tpu_custom_call.1} parent=55 // pred_check
          %p365 = pneg %p88
        $region58: #{tpu_custom_call.1} parent=55 // pred_check_branch
          %367 = sbr.rel (%p365) target = $region60
        $region59: #{tpu_custom_call.1} parent=55 // pred_region
          %368 = dma.done %s361, 512
        $region60: #{tpu_custom_call.1} parent=55 // pred_fallthru
          _
        // Predicated region
        $region61: #{tpu_custom_call.1} parent=55 // pred_check
          %p369 = pneg %p172
        $region62: #{tpu_custom_call.1} parent=55 // pred_check_branch
          %371 = sbr.rel (%p369) target = $region64
        $region63: #{tpu_custom_call.1} parent=55 // pred_region
          %372 = dma.done [#allocation6], 512
        $region64: #{tpu_custom_call.1} parent=55 // pred_fallthru
          _
        // Predicated region
        $region65: #{tpu_custom_call.1} parent=55 // pred_check
          %p373 = pneg %p214
        $region66: #{tpu_custom_call.1} parent=55 // pred_check_branch
          %375 = sbr.rel (%p373) target = $region68
        $region67: #{tpu_custom_call.1} parent=55 // pred_region
          %376 = dma.done [#allocation6], 512
        $region68: #{tpu_custom_call.1} parent=55 // pred_fallthru
          _
        %p377 = scmp.lt.s32.totalorder %s31, 1
        %s378 = scalar_select %p377, %s31, 1
        %s379 = smul.addr %s378, 8
        %s380 = smul.addr %s379, 8
        %s381 = scalar_lea.vmem %s0, %s380
        %p382 = pneg %p60
        %p383 = pneg %p57
        %s384 = sand.u32 %s75, 1
        %s385 = scalar_lea.sflag [#allocation3], %s384
        %s386 = sand.u32 %s75, 1
        %s387 = smul.addr %s386, 32
        %s388 = scalar_lea.vmem [#allocation2], %s387
        %p389 = pneg %p88
        %p390 = pneg %p85
        %p391 = pneg %p109
        %p392 = pneg %p106
        %p393 = pneg %p130
        %p394 = pneg %p127
        %p395 = pneg %p151
        %p396 = pneg %p148
        %p397 = pneg %p172
        %p398 = pneg %p169
        %p399 = pneg %p193
        %p400 = pneg %p190
        %p401 = pneg %p214
        %p402 = pneg %p211
        %p403 = pneg %p235
        %p404 = pneg %p232
        %p405 = pneg %p263
        %p406 = pneg %p260
        %s407 = sand.u32 %s250, 1
        %s408 = scalar_lea.sflag [#allocation4], %s407
        %s409 = sand.u32 %s250, 1
        %s410 = smul.addr %s409, 32
        %s411 = scalar_lea.vmem [#allocation8], %s410
        %p412 = scmp.lt.s32.totalorder %s31, 1
        %s413 = scalar_select %p412, %s31, 1
        %s414 = smul.addr %s413, 8
        %s415 = smul.addr %s414, 8
        %s416 = scalar_lea.vmem %s0, %s415
        %v418 = vld [vmem:[%s416] sm:$0xff]
        %v419 = vld [vmem:[%s416 + $0x8] sm:$0xff]
        %v420 = vld [vmem:[%s416 + $0x10] sm:$0xff]
        %v421 = vld [vmem:[%s416 + $0x18] sm:$0xff]
        %v422 = vld [vmem:[%s416 + $0x20] sm:$0xff]
        %v423 = vld [vmem:[%s416 + $0x28] sm:$0xff]
        %v424 = vld [vmem:[%s416 + $0x30] sm:$0xff]
        %v425 = vld [vmem:[%s416 + $0x38] sm:$0xff]
        %v426 = vld [vmem:[%s364] sm:$0xff]
        %v427 = vld [vmem:[%s364 + $0x8] sm:$0xff]
        %v428 = vld [vmem:[%s364 + $0x10] sm:$0xff]
        %v429 = vld [vmem:[%s364 + $0x18] sm:$0xff]
        %v430 = vadd.f32 %v418, %v419
        %431 = vadd.xlane.f32.xlu0 %v430
        %v432 = vpop.xlane.xlu0 %431
        %v433 = vadd.f32 %v420, %v421
        %434 = vadd.xlane.f32.xlu0 %v433
        %v435 = vpop.xlane.xlu0 %434
        %v436 = vadd.f32 %v422, %v423
        %437 = vadd.xlane.f32.xlu0 %v436
        %v438 = vpop.xlane.xlu0 %437
        %v439 = vadd.f32 %v424, %v425
        %440 = vadd.xlane.f32.xlu0 %v439
        %v441 = vpop.xlane.xlu0 %440
        %v442 = vmul.f32 %v432, 0.00390625
        %v443 = vmul.f32 %v435, 0.00390625
        %v444 = vmul.f32 %v438, 0.00390625
        %v445 = vmul.f32 %v441, 0.00390625
        %v446 = vmul.f32 %v418, %v418
        %v447 = vmul.f32 %v419, %v419
        %v448 = vmul.f32 %v420, %v420
        %v449 = vmul.f32 %v421, %v421
        %v450 = vmul.f32 %v422, %v422
        %v451 = vmul.f32 %v423, %v423
        %v452 = vmul.f32 %v424, %v424
        %v453 = vmul.f32 %v425, %v425
        %v454 = vadd.f32 %v446, %v447
        %455 = vadd.xlane.f32.xlu0 %v454
        %v456 = vpop.xlane.xlu0 %455
        %v457 = vadd.f32 %v448, %v449
        %458 = vadd.xlane.f32.xlu0 %v457
        %v459 = vpop.xlane.xlu0 %458
        %v460 = vadd.f32 %v450, %v451
        %461 = vadd.xlane.f32.xlu0 %v460
        %v462 = vpop.xlane.xlu0 %461
        %v463 = vadd.f32 %v452, %v453
        %464 = vadd.xlane.f32.xlu0 %v463
        %v465 = vpop.xlane.xlu0 %464
        %v466 = vmul.f32 %v456, 0.00390625
        %v467 = vmul.f32 %v459, 0.00390625
        %v468 = vmul.f32 %v462, 0.00390625
        %v469 = vmul.f32 %v465, 0.00390625
        %v470 = vlaneseq
        %v471 = vand.u32 %v470, 127
        %vm472 = vcmp.eq.s32.totalorder %v471, 0
        %v473 = vsel %vm472, %v442, %v466
        %v474 = vsel %vm472, %v443, %v467
        %v475 = vsel %vm472, %v444, %v468
        %v476 = vsel %vm472, %v445, %v469
        %v477 = vld [vmem:[%s2] sm:$0xff]
        %v478 = vld [vmem:[%s2 + $0x8] sm:$0xff]
        %v479 = vld [vmem:[%s2 + $0x10] sm:$0xff]
        %v480 = vld [vmem:[%s2 + $0x18] sm:$0xff]
        %vm481 = vcmask 261120
        %v483 = vsel %vm481, %v477, 0
        %v486 = vsel %vm481, %v478, 0
        %v489 = vsel %vm481, %v479, 0
        %v492 = vsel %vm481, %v480, 0
        %494 = vmatprep.subr.mxu0 0.0
        %495 = vmatpush1.msra.mxu0 %v473
        %496 = vmatprep.subr.mxu0 0.0
        %497 = vmatpush1.msra.mxu0 %v474
        %498 = vmatprep.subr.mxu0 0.0
        %499 = vmatpush1.msra.mxu0 %v475
        %500 = vmatprep.subr.mxu0 0.0
        %501 = vmatpush1.msra.mxu0 %v476
        %502 = vmatprep.subr.mxu0 0.0
        %503 = vmatpush1.msra.mxu0 0.0
        %504 = vmatprep.subr.mxu0 0.0
        %505 = vmatpush1.msra.mxu0 0.0
        %506 = vmatprep.subr.mxu0 0.0
        %507 = vmatpush1.msra.mxu0 0.0
        %508 = vmatprep.subr.mxu0 0.0
        %509 = vmatpush1.msra.mxu0 0.0
        %510 = vmatprep.subr.mxu0 0.0
        %511 = vmatpush1.msra.mxu0 0.0
        %512 = vmatprep.subr.mxu0 0.0
        %513 = vmatpush1.msra.mxu0 0.0
        %514 = vmatprep.subr.mxu0 0.0
        %515 = vmatpush1.msra.mxu0 0.0
        %516 = vmatprep.subr.mxu0 0.0
        %517 = vmatpush1.msra.mxu0 0.0
        %518 = vmatprep.subr.mxu0 0.0
        %519 = vmatpush1.msra.mxu0 0.0
        %520 = vmatprep.subr.mxu0 0.0
        %521 = vmatpush1.msra.mxu0 0.0
        %522 = vmatprep.subr.mxu0 0.0
        %523 = vmatpush1.msra.mxu0 0.0
        %524 = vmatprep.subr.mxu0 0.0
        %525 = vmatpush1.msra.mxu0 0.0
        %526 = vmatprep.subr.mxu0 0.0
        %527 = vmatpush1.msra.mxu0 0.0
        %528 = vmatprep.subr.mxu0 0.0
        %529 = vmatpush1.msra.mxu0 0.0
        %530 = vmatprep.subr.mxu0 0.0
        %531 = vmatpush1.msra.mxu0 0.0
        %532 = vmatprep.subr.mxu0 0.0
        %533 = vmatpush1.msra.mxu0 0.0
        %534 = vmatprep.subr.mxu0 0.0
        %535 = vmatpush1.msra.mxu0 0.0
        %536 = vmatprep.subr.mxu0 0.0
        %537 = vmatpush1.msra.mxu0 0.0
        %538 = vmatprep.subr.mxu0 0.0
        %539 = vmatpush1.msra.mxu0 0.0
        %540 = vmatprep.subr.mxu0 0.0
        %541 = vmatpush1.msra.mxu0 0.0
        %542 = vmatprep.subr.mxu0 0.0
        %543 = vmatpush1.msra.mxu0 0.0
        %544 = vmatprep.subr.mxu0 0.0
        %545 = vmatpush1.msra.mxu0 0.0
        %546 = vmatprep.subr.mxu0 0.0
        %547 = vmatpush1.msra.mxu0 0.0
        %548 = vmatprep.subr.mxu0 0.0
        %549 = vmatpush1.msra.mxu0 0.0
        %550 = vmatprep.subr.mxu0 0.0
        %551 = vmatpush1.msra.mxu0 0.0
        %552 = vmatprep.subr.mxu0 0.0
        %553 = vmatpush1.msra.mxu0 0.0
        %554 = vmatprep.subr.mxu0 0.0
        %555 = vmatpush1.msra.mxu0 0.0
        %556 = vmatprep.subr.mxu0 0.0
        %557 = vmatpush1.msra.mxu0 0.0
        %558 = vmatprep.mubr.f32.mxu0 0.0
        %559 = vmatmul.mubr.f32.gmra.mrb[0].mxu0 %v483
        %v560 = vpop.f32.mrb[0].mxu0
        %v561 = vadd.f32 0.0, %v560
        %v562 = vpop.f32.mrb[0].mxu0
        %563 = vmatprep.mubr.f32.mxu0 0.0
        %564 = vmatmul.mubr.f32.gmra.mrb[0].mxu0 %v486
        %v565 = vpop.f32.mrb[0].mxu0
        %v566 = vadd.f32 0.0, %v565
        %v567 = vpop.f32.mrb[0].mxu0
        %568 = vmatprep.mubr.f32.mxu0 0.0
        %569 = vmatmul.mubr.f32.gmra.mrb[0].mxu0 %v489
        %v570 = vpop.f32.mrb[0].mxu0
        %v571 = vadd.f32 0.0, %v570
        %v572 = vpop.f32.mrb[0].mxu0
        %573 = vmatprep.mubr.f32.mxu0 0.0
        %574 = vmatmul.mubr.f32.gmra.mrb[0].mxu0 %v492
        %v575 = vpop.f32.mrb[0].mxu0
        %v576 = vadd.f32 0.0, %v575
        %v577 = vpop.f32.mrb[0].mxu0
        %578 = vdwg.mxu0
        %v579 = vmul.f32 %v561, %v561
        %v580 = vmul.f32 %v566, %v566
        %v581 = vmul.f32 %v571, %v571
        %v582 = vmul.f32 %v576, %v576
        %587 = vrot.lane.b32.xlu0 %v579, 1
        %v588 = vpop.permute.xlu0 %587
        %589 = vrot.lane.b32.xlu0 %v580, 1
        %v590 = vpop.permute.xlu0 %589
        %591 = vrot.lane.b32.xlu0 %v581, 1
        %v592 = vpop.permute.xlu0 %591
        %593 = vrot.lane.b32.xlu0 %v582, 1
        %v594 = vpop.permute.xlu0 %593
        %v599 = vsub.f32 %v561, %v588
        %v600 = vsub.f32 %v566, %v590
        %v601 = vsub.f32 %v571, %v592
        %v602 = vsub.f32 %v576, %v594
        %v603 = vadd.f32 %v599, 1e-05
        %v604 = vadd.f32 %v600, 1e-05
        %v605 = vadd.f32 %v601, 1e-05
        %v606 = vadd.f32 %v602, 1e-05
        %v607 = vrsqrt.pop %v603
        %v608 = vrsqrt.pop %v604
        %v609 = vrsqrt.pop %v605
        %v610 = vrsqrt.pop %v606
        %v611 = vld [vmem:[%s3] sm:$0xff]
        %v612 = vld [vmem:[%s3 + $0x8] sm:$0xff]
        %v613 = vld [vmem:[%s3 + $0x10] sm:$0xff]
        %v614 = vld [vmem:[%s3 + $0x18] sm:$0xff]
        %619 = vrot.lane.b32.xlu0 %v611, 1
        %v620 = vpop.permute.xlu0 %619
        %621 = vrot.lane.b32.xlu0 %v612, 1
        %v622 = vpop.permute.xlu0 %621
        %623 = vrot.lane.b32.xlu0 %v613, 1
        %v624 = vpop.permute.xlu0 %623
        %625 = vrot.lane.b32.xlu0 %v614, 1
        %v626 = vpop.permute.xlu0 %625
        %v631 = vmul.f32 %v607, %v620
        %v632 = vmul.f32 %v608, %v622
        %v633 = vmul.f32 %v609, %v624
        %v634 = vmul.f32 %v610, %v626
        %v635 = vld [vmem:[%s4] sm:$0xff]
        %v636 = vld [vmem:[%s4 + $0x8] sm:$0xff]
        %v637 = vld [vmem:[%s4 + $0x10] sm:$0xff]
        %v638 = vld [vmem:[%s4 + $0x18] sm:$0xff]
        %643 = vrot.lane.b32.xlu0 %v631, 127
        %v644 = vpop.permute.xlu0 %643
        %645 = vrot.lane.b32.xlu0 %v632, 127
        %v646 = vpop.permute.xlu0 %645
        %647 = vrot.lane.b32.xlu0 %v633, 127
        %v648 = vpop.permute.xlu0 %647
        %649 = vrot.lane.b32.xlu0 %v634, 127
        %v650 = vpop.permute.xlu0 %649
        %v655 = vmul.f32 %v561, %v644
        %v656 = vmul.f32 %v566, %v646
        %v657 = vmul.f32 %v571, %v648
        %v658 = vmul.f32 %v576, %v650
        %v659 = vsub.f32 %v635, %v655
        %v660 = vsub.f32 %v636, %v656
        %v661 = vsub.f32 %v637, %v657
        %v662 = vsub.f32 %v638, %v658
        %663 = vset.pattern.permute.xlu0 1
        %664 = vperm.xlu0 %663, %v631
        %v665 = vpop.permute.xlu0 %664
        %667 = vset.pattern.permute.xlu0 1
        %668 = vperm.xlu0 %667, %v632
        %v669 = vpop.permute.xlu0 %668
        %671 = vset.pattern.permute.xlu0 1
        %672 = vperm.xlu0 %671, %v633
        %v673 = vpop.permute.xlu0 %672
        %675 = vset.pattern.permute.xlu0 1
        %676 = vperm.xlu0 %675, %v634
        %v677 = vpop.permute.xlu0 %676
        %v679 = vmul.f32 %v418, %v665
        %v680 = vmul.f32 %v419, %v665
        %v681 = vmul.f32 %v420, %v669
        %v682 = vmul.f32 %v421, %v669
        %v683 = vmul.f32 %v422, %v673
        %v684 = vmul.f32 %v423, %v673
        %v685 = vmul.f32 %v424, %v677
        %v686 = vmul.f32 %v425, %v677
        %688 = vset.pattern.permute.xlu0 0
        %689 = vperm.xlu0 %688, %v659
        %v690 = vpop.permute.xlu0 %689
        %693 = vset.pattern.permute.xlu0 0
        %694 = vperm.xlu0 %693, %v660
        %v695 = vpop.permute.xlu0 %694
        %698 = vset.pattern.permute.xlu0 0
        %699 = vperm.xlu0 %698, %v661
        %v700 = vpop.permute.xlu0 %699
        %703 = vset.pattern.permute.xlu0 0
        %704 = vperm.xlu0 %703, %v662
        %v705 = vpop.permute.xlu0 %704
        %v707 = vadd.f32 %v679, %v690
        %v708 = vadd.f32 %v680, %v690
        %v709 = vadd.f32 %v681, %v695
        %v710 = vadd.f32 %v682, %v695
        %v711 = vadd.f32 %v683, %v700
        %v712 = vadd.f32 %v684, %v700
        %v713 = vadd.f32 %v685, %v705
        %v714 = vadd.f32 %v686, %v705
        %v715 = vmul.f32 %v426, %v665
        %v716 = vmul.f32 %v427, %v669
        %v717 = vmul.f32 %v428, %v673
        %v718 = vmul.f32 %v429, %v677
        %v719 = vadd.f32 %v715, %v690
        %v720 = vadd.f32 %v716, %v695
        %v721 = vadd.f32 %v717, %v700
        %v722 = vadd.f32 %v718, %v705
        %v723 = vld [vmem:[%s6] sm:$0xff]
        %v724 = vld [vmem:[%s6 + $0x8] sm:$0xff]
        %v725 = vld [vmem:[%s6 + $0x10] sm:$0xff]
        %v726 = vld [vmem:[%s6 + $0x18] sm:$0xff]
        %v727 = vld [vmem:[%s6 + $0x20] sm:$0xff]
        %v728 = vld [vmem:[%s6 + $0x28] sm:$0xff]
        %v729 = vld [vmem:[%s6 + $0x30] sm:$0xff]
        %v730 = vld [vmem:[%s6 + $0x38] sm:$0xff]
        %v732 = vsel %vm481, %v723, 0
        %v735 = vsel %vm481, %v724, 0
        %v738 = vsel %vm481, %v725, 0
        %v741 = vsel %vm481, %v726, 0
        %v744 = vsel %vm481, %v727, 0
        %v747 = vsel %vm481, %v728, 0
        %v750 = vsel %vm481, %v729, 0
        %v753 = vsel %vm481, %v730, 0
        %755 = vmatprep.subr.mxu0 %v708
        %756 = vmatpush1.msra.mxu0 %v707
        %757 = vmatprep.subr.mxu0 %v710
        %758 = vmatpush1.msra.mxu0 %v709
        %759 = vmatprep.subr.mxu0 %v712
        %760 = vmatpush1.msra.mxu0 %v711
        %761 = vmatprep.subr.mxu0 %v714
        %762 = vmatpush1.msra.mxu0 %v713
        %763 = vmatprep.subr.mxu0 0.0
        %764 = vmatpush1.msra.mxu0 0.0
        %765 = vmatprep.subr.mxu0 0.0
        %766 = vmatpush1.msra.mxu0 0.0
        %767 = vmatprep.subr.mxu0 0.0
        %768 = vmatpush1.msra.mxu0 0.0
        %769 = vmatprep.subr.mxu0 0.0
        %770 = vmatpush1.msra.mxu0 0.0
        %771 = vmatprep.subr.mxu0 0.0
        %772 = vmatpush1.msra.mxu0 0.0
        %773 = vmatprep.subr.mxu0 0.0
        %774 = vmatpush1.msra.mxu0 0.0
        %775 = vmatprep.subr.mxu0 0.0
        %776 = vmatpush1.msra.mxu0 0.0
        %777 = vmatprep.subr.mxu0 0.0
        %778 = vmatpush1.msra.mxu0 0.0
        %779 = vmatprep.subr.mxu0 0.0
        %780 = vmatpush1.msra.mxu0 0.0
        %781 = vmatprep.subr.mxu0 0.0
        %782 = vmatpush1.msra.mxu0 0.0
        %783 = vmatprep.subr.mxu0 0.0
        %784 = vmatpush1.msra.mxu0 0.0
        %785 = vmatprep.subr.mxu0 0.0
        %786 = vmatpush1.msra.mxu0 0.0
        %787 = vmatprep.subr.mxu0 0.0
        %788 = vmatpush1.msra.mxu0 0.0
        %789 = vmatprep.subr.mxu0 0.0
        %790 = vmatpush1.msra.mxu0 0.0
        %791 = vmatprep.subr.mxu0 0.0
        %792 = vmatpush1.msra.mxu0 0.0
        %793 = vmatprep.subr.mxu0 0.0
        %794 = vmatpush1.msra.mxu0 0.0
        %795 = vmatprep.subr.mxu0 0.0
        %796 = vmatpush1.msra.mxu0 0.0
        %797 = vmatprep.subr.mxu0 0.0
        %798 = vmatpush1.msra.mxu0 0.0
        %799 = vmatprep.subr.mxu0 0.0
        %800 = vmatpush1.msra.mxu0 0.0
        %801 = vmatprep.subr.mxu0 0.0
        %802 = vmatpush1.msra.mxu0 0.0
        %803 = vmatprep.subr.mxu0 0.0
        %804 = vmatpush1.msra.mxu0 0.0
        %805 = vmatprep.subr.mxu0 0.0
        %806 = vmatpush1.msra.mxu0 0.0
        %807 = vmatprep.subr.mxu0 0.0
        %808 = vmatpush1.msra.mxu0 0.0
        %809 = vmatprep.subr.mxu0 0.0
        %810 = vmatpush1.msra.mxu0 0.0
        %811 = vmatprep.subr.mxu0 0.0
        %812 = vmatpush1.msra.mxu0 0.0
        %813 = vmatprep.subr.mxu0 0.0
        %814 = vmatpush1.msra.mxu0 0.0
        %815 = vmatprep.subr.mxu0 0.0
        %816 = vmatpush1.msra.mxu0 0.0
        %817 = vmatprep.subr.mxu0 0.0
        %818 = vmatpush1.msra.mxu0 0.0
        %819 = vmatprep.mubr.f32.mxu0 0.0
        %820 = vmatmul.mubr.f32.gmra.mrb[0].mxu0 %v732
        %v821 = vpop.f32.mrb[0].mxu0
        %v822 = vadd.f32 0.0, %v821
        %v823 = vpop.f32.mrb[0].mxu0
        %v824 = vadd.f32 0.0, %v823
        %825 = vmatprep.mubr.f32.mxu0 0.0
        %826 = vmatmul.mubr.f32.gmra.mrb[0].mxu0 %v735
        %v827 = vpop.f32.mrb[0].mxu0
        %v828 = vadd.f32 0.0, %v827
        %v829 = vpop.f32.mrb[0].mxu0
        %v830 = vadd.f32 0.0, %v829
        %831 = vmatprep.mubr.f32.mxu0 0.0
        %832 = vmatmul.mubr.f32.gmra.mrb[0].mxu0 %v738
        %v833 = vpop.f32.mrb[0].mxu0
        %v834 = vadd.f32 0.0, %v833
        %v835 = vpop.f32.mrb[0].mxu0
        %v836 = vadd.f32 0.0, %v835
        %837 = vmatprep.mubr.f32.mxu0 0.0
        %838 = vmatmul.mubr.f32.gmra.mrb[0].mxu0 %v741
        %v839 = vpop.f32.mrb[0].mxu0
        %v840 = vadd.f32 0.0, %v839
        %v841 = vpop.f32.mrb[0].mxu0
        %v842 = vadd.f32 0.0, %v841
        %843 = vmatprep.mubr.f32.mxu0 0.0
        %844 = vmatmul.mubr.f32.gmra.mrb[0].mxu0 %v744
        %v845 = vpop.f32.mrb[0].mxu0
        %v846 = vadd.f32 0.0, %v845
        %v847 = vpop.f32.mrb[0].mxu0
        %v848 = vadd.f32 0.0, %v847
        %849 = vmatprep.mubr.f32.mxu0 0.0
        %850 = vmatmul.mubr.f32.gmra.mrb[0].mxu0 %v747
        %v851 = vpop.f32.mrb[0].mxu0
        %v852 = vadd.f32 0.0, %v851
        %v853 = vpop.f32.mrb[0].mxu0
        %v854 = vadd.f32 0.0, %v853
        %855 = vmatprep.mubr.f32.mxu0 0.0
        %856 = vmatmul.mubr.f32.gmra.mrb[0].mxu0 %v750
        %v857 = vpop.f32.mrb[0].mxu0
        %v858 = vadd.f32 0.0, %v857
        %v859 = vpop.f32.mrb[0].mxu0
        %v860 = vadd.f32 0.0, %v859
        %861 = vmatprep.mubr.f32.mxu0 0.0
        %862 = vmatmul.mubr.f32.gmra.mrb[0].mxu0 %v753
        %v863 = vpop.f32.mrb[0].mxu0
        %v864 = vadd.f32 0.0, %v863
        %v865 = vpop.f32.mrb[0].mxu0
        %v866 = vadd.f32 0.0, %v865
        %867 = vdwg.mxu0
        %v868 = vld [vmem:[#allocation5] sm:$0xff]
        %v869 = vld [vmem:[#allocation5 + $0x8] sm:$0xff]
        %v870 = vld [vmem:[#allocation5 + $0x10] sm:$0xff]
        %v871 = vld [vmem:[#allocation5 + $0x18] sm:$0xff]
        %v873 = vsel %vm481, %v868, 0
        %v876 = vsel %vm481, %v869, 0
        %v879 = vsel %vm481, %v870, 0
        %v882 = vsel %vm481, %v871, 0
        %884 = vmatprep.subr.mxu0 0.0
        %885 = vmatpush1.msra.mxu0 %v719
        %886 = vmatprep.subr.mxu0 0.0
        %887 = vmatpush1.msra.mxu0 %v720
        %888 = vmatprep.subr.mxu0 0.0
        %889 = vmatpush1.msra.mxu0 %v721
        %890 = vmatprep.subr.mxu0 0.0
        %891 = vmatpush1.msra.mxu0 %v722
        %892 = vmatprep.subr.mxu0 0.0
        %893 = vmatpush1.msra.mxu0 0.0
        %894 = vmatprep.subr.mxu0 0.0
        %895 = vmatpush1.msra.mxu0 0.0
        %896 = vmatprep.subr.mxu0 0.0
        %897 = vmatpush1.msra.mxu0 0.0
        %898 = vmatprep.subr.mxu0 0.0
        %899 = vmatpush1.msra.mxu0 0.0
        %900 = vmatprep.subr.mxu0 0.0
        %901 = vmatpush1.msra.mxu0 0.0
        %902 = vmatprep.subr.mxu0 0.0
        %903 = vmatpush1.msra.mxu0 0.0
        %904 = vmatprep.subr.mxu0 0.0
        %905 = vmatpush1.msra.mxu0 0.0
        %906 = vmatprep.subr.mxu0 0.0
        %907 = vmatpush1.msra.mxu0 0.0
        %908 = vmatprep.subr.mxu0 0.0
        %909 = vmatpush1.msra.mxu0 0.0
        %910 = vmatprep.subr.mxu0 0.0
        %911 = vmatpush1.msra.mxu0 0.0
        %912 = vmatprep.subr.mxu0 0.0
        %913 = vmatpush1.msra.mxu0 0.0
        %914 = vmatprep.subr.mxu0 0.0
        %915 = vmatpush1.msra.mxu0 0.0
        %916 = vmatprep.subr.mxu0 0.0
        %917 = vmatpush1.msra.mxu0 0.0
        %918 = vmatprep.subr.mxu0 0.0
        %919 = vmatpush1.msra.mxu0 0.0
        %920 = vmatprep.subr.mxu0 0.0
        %921 = vmatpush1.msra.mxu0 0.0
        %922 = vmatprep.subr.mxu0 0.0
        %923 = vmatpush1.msra.mxu0 0.0
        %924 = vmatprep.subr.mxu0 0.0
        %925 = vmatpush1.msra.mxu0 0.0
        %926 = vmatprep.subr.mxu0 0.0
        %927 = vmatpush1.msra.mxu0 0.0
        %928 = vmatprep.subr.mxu0 0.0
        %929 = vmatpush1.msra.mxu0 0.0
        %930 = vmatprep.subr.mxu0 0.0
        %931 = vmatpush1.msra.mxu0 0.0
        %932 = vmatprep.subr.mxu0 0.0
        %933 = vmatpush1.msra.mxu0 0.0
        %934 = vmatprep.subr.mxu0 0.0
        %935 = vmatpush1.msra.mxu0 0.0
        %936 = vmatprep.subr.mxu0 0.0
        %937 = vmatpush1.msra.mxu0 0.0
        %938 = vmatprep.subr.mxu0 0.0
        %939 = vmatpush1.msra.mxu0 0.0
        %940 = vmatprep.subr.mxu0 0.0
        %941 = vmatpush1.msra.mxu0 0.0
        %942 = vmatprep.subr.mxu0 0.0
        %943 = vmatpush1.msra.mxu0 0.0
        %944 = vmatprep.subr.mxu0 0.0
        %945 = vmatpush1.msra.mxu0 0.0
        %946 = vmatprep.subr.mxu0 0.0
        %947 = vmatpush1.msra.mxu0 0.0
        %948 = vmatprep.mubr.f32.mxu0 0.0
        %949 = vmatmul.mubr.f32.gmra.mrb[0].mxu0 %v873
        %v950 = vpop.f32.mrb[0].mxu0
        %v951 = vadd.f32 0.0, %v950
        %v952 = vpop.f32.mrb[0].mxu0
        %953 = vmatprep.mubr.f32.mxu0 0.0
        %954 = vmatmul.mubr.f32.gmra.mrb[0].mxu0 %v876
        %v955 = vpop.f32.mrb[0].mxu0
        %v956 = vadd.f32 0.0, %v955
        %v957 = vpop.f32.mrb[0].mxu0
        %958 = vmatprep.mubr.f32.mxu0 0.0
        %959 = vmatmul.mubr.f32.gmra.mrb[0].mxu0 %v879
        %v960 = vpop.f32.mrb[0].mxu0
        %v961 = vadd.f32 0.0, %v960
        %v962 = vpop.f32.mrb[0].mxu0
        %963 = vmatprep.mubr.f32.mxu0 0.0
        %964 = vmatmul.mubr.f32.gmra.mrb[0].mxu0 %v882
        %v965 = vpop.f32.mrb[0].mxu0
        %v966 = vadd.f32 0.0, %v965
        %v967 = vpop.f32.mrb[0].mxu0
        %968 = vdwg.mxu0
        %969 = vxpose.xlu0.b32.start [1/16] %v951, 128
        %970 = vxpose.xlu0.b32.cont [2/16] %v956, 128
        %971 = vxpose.xlu0.b32.cont [3/16] 0.0, 128
        %972 = vxpose.xlu0.b32.cont [4/16] 0.0, 128
        %973 = vxpose.xlu0.b32.cont [5/16] 0.0, 128
        %974 = vxpose.xlu0.b32.cont [6/16] 0.0, 128
        %975 = vxpose.xlu0.b32.cont [7/16] 0.0, 128
        %976 = vxpose.xlu0.b32.cont [8/16] 0.0, 128
        %977 = vxpose.xlu0.b32.cont [9/16] 0.0, 128
        %978 = vxpose.xlu0.b32.cont [10/16] 0.0, 128
        %979 = vxpose.xlu0.b32.cont [11/16] 0.0, 128
        %980 = vxpose.xlu0.b32.cont [12/16] 0.0, 128
        %981 = vxpose.xlu0.b32.cont [13/16] 0.0, 128
        %982 = vxpose.xlu0.b32.cont [14/16] 0.0, 128
        %983 = vxpose.xlu0.b32.cont [15/16] 0.0, 128
        %984 = vxpose.xlu0.b32.end [16/16] 0.0, 128
        %v985 = vpop.trf.xlu0
        %v986 = vpop.trf.xlu0
        %v987 = vpop.trf.xlu0
        %v988 = vpop.trf.xlu0
        %v989 = vpop.trf.xlu0
        %v990 = vpop.trf.xlu0
        %v991 = vpop.trf.xlu0
        %v992 = vpop.trf.xlu0
        %v993 = vpop.trf.xlu0
        %v994 = vpop.trf.xlu0
        %v995 = vpop.trf.xlu0
        %v996 = vpop.trf.xlu0
        %v997 = vpop.trf.xlu0
        %v998 = vpop.trf.xlu0
        %v999 = vpop.trf.xlu0
        %v1000 = vpop.trf.xlu0
        %v1001 = vmul.f32 %v985, 0.17677669
        %v1002 = vmul.f32 %v986, 0.17677669
        %v1003 = vmul.f32 %v987, 0.17677669
        %v1004 = vmul.f32 %v988, 0.17677669
        %v1005 = vmul.f32 %v989, 0.17677669
        %v1006 = vmul.f32 %v990, 0.17677669
        %v1007 = vmul.f32 %v991, 0.17677669
        %v1008 = vmul.f32 %v992, 0.17677669
        %v1009 = vmul.f32 %v993, 0.17677669
        %v1010 = vmul.f32 %v994, 0.17677669
        %v1011 = vmul.f32 %v995, 0.17677669
        %v1012 = vmul.f32 %v996, 0.17677669
        %v1013 = vmul.f32 %v997, 0.17677669
        %v1014 = vmul.f32 %v998, 0.17677669
        %v1015 = vmul.f32 %v999, 0.17677669
        %v1016 = vmul.f32 %v1000, 0.17677669
        %v1017 = vpack.c.bf16 %v1002, %v1001
        %v1018 = vpack.c.bf16 %v1004, %v1003
        %v1019 = vpack.c.bf16 %v1006, %v1005
        %v1020 = vpack.c.bf16 %v1008, %v1007
        %v1021 = vpack.c.bf16 %v1010, %v1009
        %v1022 = vpack.c.bf16 %v1012, %v1011
        %v1023 = vpack.c.bf16 %v1014, %v1013
        %v1024 = vpack.c.bf16 %v1016, %v1015
        %v1025 = vpack.c.bf16 %v828, %v822
        %v1026 = vpack.c.bf16 %v830, %v824
        %v1027 = vpack.c.bf16 %v840, %v834
        %v1028 = vpack.c.bf16 %v842, %v836
        %vm1029 = vcmask 130048
        %v1031 = vsel %vm1029, %v1017, 0
        %v1034 = vsel %vm1029, %v1018, 0
        %v1037 = vsel %vm1029, %v1019, 0
        %v1040 = vsel %vm1029, %v1020, 0
        %v1043 = vsel %vm1029, %v1021, 0
        %v1046 = vsel %vm1029, %v1022, 0
        %v1049 = vsel %vm1029, %v1023, 0
        %v1052 = vsel %vm1029, %v1024, 0
        %1054 = vmatprep.subr.bf16.mxu0 %v1026
        %1055 = vmatpush1.bf16.msra.mxu0 %v1025
        %1056 = vmatprep.subr.bf16.mxu0 0
        %1057 = vmatpush1.bf16.msra.mxu0 0
        %1058 = vmatprep.subr.bf16.mxu0 0
        %1059 = vmatpush1.bf16.msra.mxu0 0
        %1060 = vmatprep.subr.bf16.mxu0 0
        %1061 = vmatpush1.bf16.msra.mxu0 0
        %1062 = vmatprep.subr.bf16.mxu0 0
        %1063 = vmatpush1.bf16.msra.mxu0 0
        %1064 = vmatprep.subr.bf16.mxu0 0
        %1065 = vmatpush1.bf16.msra.mxu0 0
        %1066 = vmatprep.subr.bf16.mxu0 0
        %1067 = vmatpush1.bf16.msra.mxu0 0
        %1068 = vmatprep.subr.bf16.mxu0 0
        %1069 = vmatpush1.bf16.msra.mxu0 0
        %1070 = vmatprep.subr.bf16.mxu0 0
        %1071 = vmatpush1.bf16.msra.mxu0 0
        %1072 = vmatprep.subr.bf16.mxu0 0
        %1073 = vmatpush1.bf16.msra.mxu0 0
        %1074 = vmatprep.subr.bf16.mxu0 0
        %1075 = vmatpush1.bf16.msra.mxu0 0
        %1076 = vmatprep.subr.bf16.mxu0 0
        %1077 = vmatpush1.bf16.msra.mxu0 0
        %1078 = vmatprep.subr.bf16.mxu0 0
        %1079 = vmatpush1.bf16.msra.mxu0 0
        %1080 = vmatprep.subr.bf16.mxu0 0
        %1081 = vmatpush1.bf16.msra.mxu0 0
        %1082 = vmatprep.subr.bf16.mxu0 0
        %1083 = vmatpush1.bf16.msra.mxu0 0
        %1084 = vmatprep.subr.bf16.mxu0 0
        %1085 = vmatpush1.bf16.msra.mxu0 0
        %1086 = vmatprep.mubr.bf16.mxu0 0
        %1087 = vmatmul.mubr.bf16.gmra.mrb[0].mxu0 %v1031
        %v1088 = vpop.f32.mrb[0].mxu0
        %v1089 = vadd.f32 0.0, %v1088
        %v1090 = vpop.f32.mrb[0].mxu0
        %v1091 = vadd.f32 0.0, %v1090
        %v1092 = vpop.f32.mrb[0].mxu0
        %v1093 = vadd.f32 0.0, %v1092
        %v1094 = vpop.f32.mrb[0].mxu0
        %v1095 = vadd.f32 0.0, %v1094
        %1096 = vmatprep.mubr.bf16.mxu0 0
        %1097 = vmatmul.mubr.bf16.gmra.mrb[0].mxu0 %v1034
        %v1098 = vpop.f32.mrb[0].mxu0
        %v1099 = vadd.f32 0.0, %v1098
        %v1100 = vpop.f32.mrb[0].mxu0
        %v1101 = vadd.f32 0.0, %v1100
        %v1102 = vpop.f32.mrb[0].mxu0
        %v1103 = vadd.f32 0.0, %v1102
        %v1104 = vpop.f32.mrb[0].mxu0
        %v1105 = vadd.f32 0.0, %v1104
        %1106 = vmatprep.mubr.bf16.mxu0 0
        %1107 = vmatmul.mubr.bf16.gmra.mrb[0].mxu0 %v1037
        %v1108 = vpop.f32.mrb[0].mxu0
        %v1109 = vadd.f32 0.0, %v1108
        %v1110 = vpop.f32.mrb[0].mxu0
        %v1111 = vadd.f32 0.0, %v1110
        %v1112 = vpop.f32.mrb[0].mxu0
        %v1113 = vadd.f32 0.0, %v1112
        %v1114 = vpop.f32.mrb[0].mxu0
        %v1115 = vadd.f32 0.0, %v1114
        %1116 = vmatprep.mubr.bf16.mxu0 0
        %1117 = vmatmul.mubr.bf16.gmra.mrb[0].mxu0 %v1040
        %v1118 = vpop.f32.mrb[0].mxu0
        %v1119 = vadd.f32 0.0, %v1118
        %v1120 = vpop.f32.mrb[0].mxu0
        %v1121 = vadd.f32 0.0, %v1120
        %v1122 = vpop.f32.mrb[0].mxu0
        %v1123 = vadd.f32 0.0, %v1122
        %v1124 = vpop.f32.mrb[0].mxu0
        %v1125 = vadd.f32 0.0, %v1124
        %1126 = vmatprep.mubr.bf16.mxu0 0
        %1127 = vmatmul.mubr.bf16.gmra.mrb[0].mxu0 %v1043
        %v1128 = vpop.f32.mrb[0].mxu0
        %v1129 = vadd.f32 0.0, %v1128
        %v1130 = vpop.f32.mrb[0].mxu0
        %v1131 = vadd.f32 0.0, %v1130
        %v1132 = vpop.f32.mrb[0].mxu0
        %v1133 = vadd.f32 0.0, %v1132
        %v1134 = vpop.f32.mrb[0].mxu0
        %v1135 = vadd.f32 0.0, %v1134
        %1136 = vmatprep.mubr.bf16.mxu0 0
        %1137 = vmatmul.mubr.bf16.gmra.mrb[0].mxu0 %v1046
        %v1138 = vpop.f32.mrb[0].mxu0
        %v1139 = vadd.f32 0.0, %v1138
        %v1140 = vpop.f32.mrb[0].mxu0
        %v1141 = vadd.f32 0.0, %v1140
        %v1142 = vpop.f32.mrb[0].mxu0
        %v1143 = vadd.f32 0.0, %v1142
        %v1144 = vpop.f32.mrb[0].mxu0
        %v1145 = vadd.f32 0.0, %v1144
        %1146 = vmatprep.mubr.bf16.mxu0 0
        %1147 = vmatmul.mubr.bf16.gmra.mrb[0].mxu0 %v1049
        %v1148 = vpop.f32.mrb[0].mxu0
        %v1149 = vadd.f32 0.0, %v1148
        %v1150 = vpop.f32.mrb[0].mxu0
        %v1151 = vadd.f32 0.0, %v1150
        %v1152 = vpop.f32.mrb[0].mxu0
        %v1153 = vadd.f32 0.0, %v1152
        %v1154 = vpop.f32.mrb[0].mxu0
        %v1155 = vadd.f32 0.0, %v1154
        %1156 = vmatprep.mubr.bf16.mxu0 0
        %1157 = vmatmul.mubr.bf16.gmra.mrb[0].mxu0 %v1052
        %v1158 = vpop.f32.mrb[0].mxu0
        %v1159 = vadd.f32 0.0, %v1158
        %v1160 = vpop.f32.mrb[0].mxu0
        %v1161 = vadd.f32 0.0, %v1160
        %v1162 = vpop.f32.mrb[0].mxu0
        %v1163 = vadd.f32 0.0, %v1162
        %v1164 = vpop.f32.mrb[0].mxu0
        %v1165 = vadd.f32 0.0, %v1164
        %1166 = vdwg.mxu0
        %v1167 = vmax.f32 %v1089, %v1091
        %1168 = vmax.xlane.f32.xlu0 %v1167
        %v1169 = vpop.xlane.xlu0 %1168
        %v1170 = vmax.f32 %v1093, %v1095
        %1171 = vmax.xlane.f32.xlu0 %v1170
        %v1172 = vpop.xlane.xlu0 %1171
        %v1173 = vmax.f32 %v1099, %v1101
        %1174 = vmax.xlane.f32.xlu0 %v1173
        %v1175 = vpop.xlane.xlu0 %1174
        %v1176 = vmax.f32 %v1103, %v1105
        %1177 = vmax.xlane.f32.xlu0 %v1176
        %v1178 = vpop.xlane.xlu0 %1177
        %v1179 = vmax.f32 %v1109, %v1111
        %1180 = vmax.xlane.f32.xlu0 %v1179
        %v1181 = vpop.xlane.xlu0 %1180
        %v1182 = vmax.f32 %v1113, %v1115
        %1183 = vmax.xlane.f32.xlu0 %v1182
        %v1184 = vpop.xlane.xlu0 %1183
        %v1185 = vmax.f32 %v1119, %v1121
        %1186 = vmax.xlane.f32.xlu0 %v1185
        %v1187 = vpop.xlane.xlu0 %1186
        %v1188 = vmax.f32 %v1123, %v1125
        %1189 = vmax.xlane.f32.xlu0 %v1188
        %v1190 = vpop.xlane.xlu0 %1189
        %v1191 = vmax.f32 %v1129, %v1131
        %1192 = vmax.xlane.f32.xlu0 %v1191
        %v1193 = vpop.xlane.xlu0 %1192
        %v1194 = vmax.f32 %v1133, %v1135
        %1195 = vmax.xlane.f32.xlu0 %v1194
        %v1196 = vpop.xlane.xlu0 %1195
        %v1197 = vmax.f32 %v1139, %v1141
        %1198 = vmax.xlane.f32.xlu0 %v1197
        %v1199 = vpop.xlane.xlu0 %1198
        %v1200 = vmax.f32 %v1143, %v1145
        %1201 = vmax.xlane.f32.xlu0 %v1200
        %v1202 = vpop.xlane.xlu0 %1201
        %v1203 = vmax.f32 %v1149, %v1151
        %1204 = vmax.xlane.f32.xlu0 %v1203
        %v1205 = vpop.xlane.xlu0 %1204
        %v1206 = vmax.f32 %v1153, %v1155
        %1207 = vmax.xlane.f32.xlu0 %v1206
        %v1208 = vpop.xlane.xlu0 %1207
        %v1209 = vmax.f32 %v1159, %v1161
        %1210 = vmax.xlane.f32.xlu0 %v1209
        %v1211 = vpop.xlane.xlu0 %1210
        %v1212 = vmax.f32 %v1163, %v1165
        %1213 = vmax.xlane.f32.xlu0 %v1212
        %v1214 = vpop.xlane.xlu0 %1213
        %v1215 = vsub.f32 %v1089, %v1169
        %v1216 = vsub.f32 %v1091, %v1169
        %v1217 = vsub.f32 %v1093, %v1172
        %v1218 = vsub.f32 %v1095, %v1172
        %v1219 = vsub.f32 %v1099, %v1175
        %v1220 = vsub.f32 %v1101, %v1175
        %v1221 = vsub.f32 %v1103, %v1178
        %v1222 = vsub.f32 %v1105, %v1178
        %v1223 = vsub.f32 %v1109, %v1181
        %v1224 = vsub.f32 %v1111, %v1181
        %v1225 = vsub.f32 %v1113, %v1184
        %v1226 = vsub.f32 %v1115, %v1184
        %v1227 = vsub.f32 %v1119, %v1187
        %v1228 = vsub.f32 %v1121, %v1187
        %v1229 = vsub.f32 %v1123, %v1190
        %v1230 = vsub.f32 %v1125, %v1190
        %v1231 = vsub.f32 %v1129, %v1193
        %v1232 = vsub.f32 %v1131, %v1193
        %v1233 = vsub.f32 %v1133, %v1196
        %v1234 = vsub.f32 %v1135, %v1196
        %v1235 = vsub.f32 %v1139, %v1199
        %v1236 = vsub.f32 %v1141, %v1199
        %v1237 = vsub.f32 %v1143, %v1202
        %v1238 = vsub.f32 %v1145, %v1202
        %v1239 = vsub.f32 %v1149, %v1205
        %v1240 = vsub.f32 %v1151, %v1205
        %v1241 = vsub.f32 %v1153, %v1208
        %v1242 = vsub.f32 %v1155, %v1208
        %v1243 = vsub.f32 %v1159, %v1211
        %v1244 = vsub.f32 %v1161, %v1211
        %v1245 = vsub.f32 %v1163, %v1214
        %v1246 = vsub.f32 %v1165, %v1214
        %v1247 = vmul.f32 %v1215, 1.442695
        %v1248 = vpow.pop %v1247
        %v1249 = vmul.f32 %v1216, 1.442695
        %v1250 = vpow.pop %v1249
        %v1251 = vmul.f32 %v1217, 1.442695
        %v1252 = vpow.pop %v1251
        %v1253 = vmul.f32 %v1218, 1.442695
        %v1254 = vpow.pop %v1253
        %v1255 = vmul.f32 %v1219, 1.442695
        %v1256 = vpow.pop %v1255
        %v1257 = vmul.f32 %v1220, 1.442695
        %v1258 = vpow.pop %v1257
        %v1259 = vmul.f32 %v1221, 1.442695
        %v1260 = vpow.pop %v1259
        %v1261 = vmul.f32 %v1222, 1.442695
        %v1262 = vpow.pop %v1261
        %v1263 = vmul.f32 %v1223, 1.442695
        %v1264 = vpow.pop %v1263
        %v1265 = vmul.f32 %v1224, 1.442695
        %v1266 = vpow.pop %v1265
        %v1267 = vmul.f32 %v1225, 1.442695
        %v1268 = vpow.pop %v1267
        %v1269 = vmul.f32 %v1226, 1.442695
        %v1270 = vpow.pop %v1269
        %v1271 = vmul.f32 %v1227, 1.442695
        %v1272 = vpow.pop %v1271
        %v1273 = vmul.f32 %v1228, 1.442695
        %v1274 = vpow.pop %v1273
        %v1275 = vmul.f32 %v1229, 1.442695
        %v1276 = vpow.pop %v1275
        %v1277 = vmul.f32 %v1230, 1.442695
        %v1278 = vpow.pop %v1277
        %v1279 = vmul.f32 %v1231, 1.442695
        %v1280 = vpow.pop %v1279
        %v1281 = vmul.f32 %v1232, 1.442695
        %v1282 = vpow.pop %v1281
        %v1283 = vmul.f32 %v1233, 1.442695
        %v1284 = vpow.pop %v1283
        %v1285 = vmul.f32 %v1234, 1.442695
        %v1286 = vpow.pop %v1285
        %v1287 = vmul.f32 %v1235, 1.442695
        %v1288 = vpow.pop %v1287
        %v1289 = vmul.f32 %v1236, 1.442695
        %v1290 = vpow.pop %v1289
        %v1291 = vmul.f32 %v1237, 1.442695
        %v1292 = vpow.pop %v1291
        %v1293 = vmul.f32 %v1238, 1.442695
        %v1294 = vpow.pop %v1293
        %v1295 = vmul.f32 %v1239, 1.442695
        %v1296 = vpow.pop %v1295
        %v1297 = vmul.f32 %v1240, 1.442695
        %v1298 = vpow.pop %v1297
        %v1299 = vmul.f32 %v1241, 1.442695
        %v1300 = vpow.pop %v1299
        %v1301 = vmul.f32 %v1242, 1.442695
        %v1302 = vpow.pop %v1301
        %v1303 = vmul.f32 %v1243, 1.442695
        %v1304 = vpow.pop %v1303
        %v1305 = vmul.f32 %v1244, 1.442695
        %v1306 = vpow.pop %v1305
        %v1307 = vmul.f32 %v1245, 1.442695
        %v1308 = vpow.pop %v1307
        %v1309 = vmul.f32 %v1246, 1.442695
        %v1310 = vpow.pop %v1309
        %v1311 = vadd.f32 %v1248, %v1250
        %1312 = vadd.xlane.f32.xlu0 %v1311
        %v1313 = vpop.xlane.xlu0 %1312
        %v1314 = vadd.f32 %v1252, %v1254
        %1315 = vadd.xlane.f32.xlu0 %v1314
        %v1316 = vpop.xlane.xlu0 %1315
        %v1317 = vadd.f32 %v1256, %v1258
        %1318 = vadd.xlane.f32.xlu0 %v1317
        %v1319 = vpop.xlane.xlu0 %1318
        %v1320 = vadd.f32 %v1260, %v1262
        %1321 = vadd.xlane.f32.xlu0 %v1320
        %v1322 = vpop.xlane.xlu0 %1321
        %v1323 = vadd.f32 %v1264, %v1266
        %1324 = vadd.xlane.f32.xlu0 %v1323
        %v1325 = vpop.xlane.xlu0 %1324
        %v1326 = vadd.f32 %v1268, %v1270
        %1327 = vadd.xlane.f32.xlu0 %v1326
        %v1328 = vpop.xlane.xlu0 %1327
        %v1329 = vadd.f32 %v1272, %v1274
        %1330 = vadd.xlane.f32.xlu0 %v1329
        %v1331 = vpop.xlane.xlu0 %1330
        %v1332 = vadd.f32 %v1276, %v1278
        %1333 = vadd.xlane.f32.xlu0 %v1332
        %v1334 = vpop.xlane.xlu0 %1333
        %v1335 = vadd.f32 %v1280, %v1282
        %1336 = vadd.xlane.f32.xlu0 %v1335
        %v1337 = vpop.xlane.xlu0 %1336
        %v1338 = vadd.f32 %v1284, %v1286
        %1339 = vadd.xlane.f32.xlu0 %v1338
        %v1340 = vpop.xlane.xlu0 %1339
        %v1341 = vadd.f32 %v1288, %v1290
        %1342 = vadd.xlane.f32.xlu0 %v1341
        %v1343 = vpop.xlane.xlu0 %1342
        %v1344 = vadd.f32 %v1292, %v1294
        %1345 = vadd.xlane.f32.xlu0 %v1344
        %v1346 = vpop.xlane.xlu0 %1345
        %v1347 = vadd.f32 %v1296, %v1298
        %1348 = vadd.xlane.f32.xlu0 %v1347
        %v1349 = vpop.xlane.xlu0 %1348
        %v1350 = vadd.f32 %v1300, %v1302
        %1351 = vadd.xlane.f32.xlu0 %v1350
        %v1352 = vpop.xlane.xlu0 %1351
        %v1353 = vadd.f32 %v1304, %v1306
        %1354 = vadd.xlane.f32.xlu0 %v1353
        %v1355 = vpop.xlane.xlu0 %1354
        %v1356 = vadd.f32 %v1308, %v1310
        %1357 = vadd.xlane.f32.xlu0 %v1356
        %v1358 = vpop.xlane.xlu0 %1357
        %v1359 = vrcp.pop %v1313
        %v1360 = vrcp.pop %v1316
        %v1361 = vrcp.pop %v1319
        %v1362 = vrcp.pop %v1322
        %v1363 = vrcp.pop %v1325
        %v1364 = vrcp.pop %v1328
        %v1365 = vrcp.pop %v1331
        %v1366 = vrcp.pop %v1334
        %v1367 = vrcp.pop %v1337
        %v1368 = vrcp.pop %v1340
        %v1369 = vrcp.pop %v1343
        %v1370 = vrcp.pop %v1346
        %v1371 = vrcp.pop %v1349
        %v1372 = vrcp.pop %v1352
        %v1373 = vrcp.pop %v1355
        %v1374 = vrcp.pop %v1358
        %v1375 = vmul.f32 %v1248, %v1359
        %v1376 = vmul.f32 %v1250, %v1359
        %v1377 = vmul.f32 %v1252, %v1360
        %v1378 = vmul.f32 %v1254, %v1360
        %v1379 = vmul.f32 %v1256, %v1361
        %v1380 = vmul.f32 %v1258, %v1361
        %v1381 = vmul.f32 %v1260, %v1362
        %v1382 = vmul.f32 %v1262, %v1362
        %v1383 = vmul.f32 %v1264, %v1363
        %v1384 = vmul.f32 %v1266, %v1363
        %v1385 = vmul.f32 %v1268, %v1364
        %v1386 = vmul.f32 %v1270, %v1364
        %v1387 = vmul.f32 %v1272, %v1365
        %v1388 = vmul.f32 %v1274, %v1365
        %v1389 = vmul.f32 %v1276, %v1366
        %v1390 = vmul.f32 %v1278, %v1366
        %v1391 = vmul.f32 %v1280, %v1367
        %v1392 = vmul.f32 %v1282, %v1367
        %v1393 = vmul.f32 %v1284, %v1368
        %v1394 = vmul.f32 %v1286, %v1368
        %v1395 = vmul.f32 %v1288, %v1369
        %v1396 = vmul.f32 %v1290, %v1369
        %v1397 = vmul.f32 %v1292, %v1370
        %v1398 = vmul.f32 %v1294, %v1370
        %v1399 = vmul.f32 %v1296, %v1371
        %v1400 = vmul.f32 %v1298, %v1371
        %v1401 = vmul.f32 %v1300, %v1372
        %v1402 = vmul.f32 %v1302, %v1372
        %v1403 = vmul.f32 %v1304, %v1373
        %v1404 = vmul.f32 %v1306, %v1373
        %v1405 = vmul.f32 %v1308, %v1374
        %v1406 = vmul.f32 %v1310, %v1374
        %v1407 = vpack.c.bf16 %v1377, %v1375
        %v1408 = vpack.c.bf16 %v1378, %v1376
        %v1409 = vpack.c.bf16 %v1381, %v1379
        %v1410 = vpack.c.bf16 %v1382, %v1380
        %v1411 = vpack.c.bf16 %v1385, %v1383
        %v1412 = vpack.c.bf16 %v1386, %v1384
        %v1413 = vpack.c.bf16 %v1389, %v1387
        %v1414 = vpack.c.bf16 %v1390, %v1388
        %v1415 = vpack.c.bf16 %v1393, %v1391
        %v1416 = vpack.c.bf16 %v1394, %v1392
        %v1417 = vpack.c.bf16 %v1397, %v1395
        %v1418 = vpack.c.bf16 %v1398, %v1396
        %v1419 = vpack.c.bf16 %v1401, %v1399
        %v1420 = vpack.c.bf16 %v1402, %v1400
        %v1421 = vpack.c.bf16 %v1405, %v1403
        %v1422 = vpack.c.bf16 %v1406, %v1404
        %1423 = vmatprep.subr.bf16.mxu0 %v1408
        %1424 = vmatpush1.bf16.xpose.msra.mxu0 %v1407
        %1425 = vmatprep.subr.bf16.mxu0 %v1410
        %1426 = vmatpush1.bf16.xpose.msra.mxu0 %v1409
        %1427 = vmatprep.subr.bf16.mxu0 %v1412
        %1428 = vmatpush1.bf16.xpose.msra.mxu0 %v1411
        %1429 = vmatprep.subr.bf16.mxu0 %v1414
        %1430 = vmatpush1.bf16.xpose.msra.mxu0 %v1413
        %1431 = vmatprep.subr.bf16.mxu0 %v1416
        %1432 = vmatpush1.bf16.xpose.msra.mxu0 %v1415
        %1433 = vmatprep.subr.bf16.mxu0 %v1418
        %1434 = vmatpush1.bf16.xpose.msra.mxu0 %v1417
        %1435 = vmatprep.subr.bf16.mxu0 %v1420
        %1436 = vmatpush1.bf16.xpose.msra.mxu0 %v1419
        %1437 = vmatprep.subr.bf16.mxu0 %v1422
        %1438 = vmatpush1.bf16.xpose.msra.mxu0 %v1421
        %1439 = vmatprep.subr.bf16.mxu0 0
        %1440 = vmatpush1.bf16.xpose.msra.mxu0 0
        %1441 = vmatprep.subr.bf16.mxu0 0
        %1442 = vmatpush1.bf16.xpose.msra.mxu0 0
        %1443 = vmatprep.subr.bf16.mxu0 0
        %1444 = vmatpush1.bf16.xpose.msra.mxu0 0
        %1445 = vmatprep.subr.bf16.mxu0 0
        %1446 = vmatpush1.bf16.xpose.msra.mxu0 0
        %1447 = vmatprep.subr.bf16.mxu0 0
        %1448 = vmatpush1.bf16.xpose.msra.mxu0 0
        %1449 = vmatprep.subr.bf16.mxu0 0
        %1450 = vmatpush1.bf16.xpose.msra.mxu0 0
        %1451 = vmatprep.subr.bf16.mxu0 0
        %1452 = vmatpush1.bf16.xpose.msra.mxu0 0
        %1453 = vmatprep.subr.bf16.mxu0 0
        %1454 = vmatpush1.bf16.xpose.msra.mxu0 0
        %1455 = vmatprep.mubr.bf16.mxu0 %v1028
        %1456 = vmatmul.mubr.bf16.gmra.mrb[0].mxu0 %v1027
        %v1457 = vpop.f32.mrb[0].mxu0
        %v1458 = vadd.f32 0.0, %v1457
        %v1459 = vpop.f32.mrb[0].mxu0
        %v1460 = vpop.f32.mrb[0].mxu0
        %v1461 = vadd.f32 0.0, %v1460
        %v1462 = vpop.f32.mrb[0].mxu0
        %1463 = vdwg.mxu0
        %1464 = vxpose.xlu0.b32.start [1/16] %v961, 128
        %1465 = vxpose.xlu0.b32.cont [2/16] %v966, 128
        %1466 = vxpose.xlu0.b32.cont [3/16] 0.0, 128
        %1467 = vxpose.xlu0.b32.cont [4/16] 0.0, 128
        %1468 = vxpose.xlu0.b32.cont [5/16] 0.0, 128
        %1469 = vxpose.xlu0.b32.cont [6/16] 0.0, 128
        %1470 = vxpose.xlu0.b32.cont [7/16] 0.0, 128
        %1471 = vxpose.xlu0.b32.cont [8/16] 0.0, 128
        %1472 = vxpose.xlu0.b32.cont [9/16] 0.0, 128
        %1473 = vxpose.xlu0.b32.cont [10/16] 0.0, 128
        %1474 = vxpose.xlu0.b32.cont [11/16] 0.0, 128
        %1475 = vxpose.xlu0.b32.cont [12/16] 0.0, 128
        %1476 = vxpose.xlu0.b32.cont [13/16] 0.0, 128
        %1477 = vxpose.xlu0.b32.cont [14/16] 0.0, 128
        %1478 = vxpose.xlu0.b32.cont [15/16] 0.0, 128
        %1479 = vxpose.xlu0.b32.end [16/16] 0.0, 128
        %v1480 = vpop.trf.xlu0
        %v1481 = vpop.trf.xlu0
        %v1482 = vpop.trf.xlu0
        %v1483 = vpop.trf.xlu0
        %v1484 = vpop.trf.xlu0
        %v1485 = vpop.trf.xlu0
        %v1486 = vpop.trf.xlu0
        %v1487 = vpop.trf.xlu0
        %v1488 = vpop.trf.xlu0
        %v1489 = vpop.trf.xlu0
        %v1490 = vpop.trf.xlu0
        %v1491 = vpop.trf.xlu0
        %v1492 = vpop.trf.xlu0
        %v1493 = vpop.trf.xlu0
        %v1494 = vpop.trf.xlu0
        %v1495 = vpop.trf.xlu0
        %v1496 = vmul.f32 %v1480, 0.17677669
        %v1497 = vmul.f32 %v1481, 0.17677669
        %v1498 = vmul.f32 %v1482, 0.17677669
        %v1499 = vmul.f32 %v1483, 0.17677669
        %v1500 = vmul.f32 %v1484, 0.17677669
        %v1501 = vmul.f32 %v1485, 0.17677669
        %v1502 = vmul.f32 %v1486, 0.17677669
        %v1503 = vmul.f32 %v1487, 0.17677669
        %v1504 = vmul.f32 %v1488, 0.17677669
        %v1505 = vmul.f32 %v1489, 0.17677669
        %v1506 = vmul.f32 %v1490, 0.17677669
        %v1507 = vmul.f32 %v1491, 0.17677669
        %v1508 = vmul.f32 %v1492, 0.17677669
        %v1509 = vmul.f32 %v1493, 0.17677669
        %v1510 = vmul.f32 %v1494, 0.17677669
        %v1511 = vmul.f32 %v1495, 0.17677669
        %v1512 = vpack.c.bf16 %v1497, %v1496
        %v1513 = vpack.c.bf16 %v1499, %v1498
        %v1514 = vpack.c.bf16 %v1501, %v1500
        %v1515 = vpack.c.bf16 %v1503, %v1502
        %v1516 = vpack.c.bf16 %v1505, %v1504
        %v1517 = vpack.c.bf16 %v1507, %v1506
        %v1518 = vpack.c.bf16 %v1509, %v1508
        %v1519 = vpack.c.bf16 %v1511, %v1510
        %v1520 = vpack.c.bf16 %v852, %v846
        %v1521 = vpack.c.bf16 %v854, %v848
        %v1522 = vpack.c.bf16 %v864, %v858
        %v1523 = vpack.c.bf16 %v866, %v860
        %v1525 = vsel %vm1029, %v1512, 0
        %v1528 = vsel %vm1029, %v1513, 0
        %v1531 = vsel %vm1029, %v1514, 0
        %v1534 = vsel %vm1029, %v1515, 0
        %v1537 = vsel %vm1029, %v1516, 0
        %v1540 = vsel %vm1029, %v1517, 0
        %v1543 = vsel %vm1029, %v1518, 0
        %v1546 = vsel %vm1029, %v1519, 0
        %1548 = vmatprep.subr.bf16.mxu0 %v1521
        %1549 = vmatpush1.bf16.msra.mxu0 %v1520
        %1550 = vmatprep.subr.bf16.mxu0 0
        %1551 = vmatpush1.bf16.msra.mxu0 0
        %1552 = vmatprep.subr.bf16.mxu0 0
        %1553 = vmatpush1.bf16.msra.mxu0 0
        %1554 = vmatprep.subr.bf16.mxu0 0
        %1555 = vmatpush1.bf16.msra.mxu0 0
        %1556 = vmatprep.subr.bf16.mxu0 0
        %1557 = vmatpush1.bf16.msra.mxu0 0
        %1558 = vmatprep.subr.bf16.mxu0 0
        %1559 = vmatpush1.bf16.msra.mxu0 0
        %1560 = vmatprep.subr.bf16.mxu0 0
        %1561 = vmatpush1.bf16.msra.mxu0 0
        %1562 = vmatprep.subr.bf16.mxu0 0
        %1563 = vmatpush1.bf16.msra.mxu0 0
        %1564 = vmatprep.subr.bf16.mxu0 0
        %1565 = vmatpush1.bf16.msra.mxu0 0
        %1566 = vmatprep.subr.bf16.mxu0 0
        %1567 = vmatpush1.bf16.msra.mxu0 0
        %1568 = vmatprep.subr.bf16.mxu0 0
        %1569 = vmatpush1.bf16.msra.mxu0 0
        %1570 = vmatprep.subr.bf16.mxu0 0
        %1571 = vmatpush1.bf16.msra.mxu0 0
        %1572 = vmatprep.subr.bf16.mxu0 0
        %1573 = vmatpush1.bf16.msra.mxu0 0
        %1574 = vmatprep.subr.bf16.mxu0 0
        %1575 = vmatpush1.bf16.msra.mxu0 0
        %1576 = vmatprep.subr.bf16.mxu0 0
        %1577 = vmatpush1.bf16.msra.mxu0 0
        %1578 = vmatprep.subr.bf16.mxu0 0
        %1579 = vmatpush1.bf16.msra.mxu0 0
        %1580 = vmatprep.mubr.bf16.mxu0 0
        %1581 = vmatmul.mubr.bf16.gmra.mrb[0].mxu0 %v1525
        %v1582 = vpop.f32.mrb[0].mxu0
        %v1583 = vadd.f32 0.0, %v1582
        %v1584 = vpop.f32.mrb[0].mxu0
        %v1585 = vadd.f32 0.0, %v1584
        %v1586 = vpop.f32.mrb[0].mxu0
        %v1587 = vadd.f32 0.0, %v1586
        %v1588 = vpop.f32.mrb[0].mxu0
        %v1589 = vadd.f32 0.0, %v1588
        %1590 = vmatprep.mubr.bf16.mxu0 0
        %1591 = vmatmul.mubr.bf16.gmra.mrb[0].mxu0 %v1528
        %v1592 = vpop.f32.mrb[0].mxu0
        %v1593 = vadd.f32 0.0, %v1592
        %v1594 = vpop.f32.mrb[0].mxu0
        %v1595 = vadd.f32 0.0, %v1594
        %v1596 = vpop.f32.mrb[0].mxu0
        %v1597 = vadd.f32 0.0, %v1596
        %v1598 = vpop.f32.mrb[0].mxu0
        %v1599 = vadd.f32 0.0, %v1598
        %1600 = vmatprep.mubr.bf16.mxu0 0
        %1601 = vmatmul.mubr.bf16.gmra.mrb[0].mxu0 %v1531
        %v1602 = vpop.f32.mrb[0].mxu0
        %v1603 = vadd.f32 0.0, %v1602
        %v1604 = vpop.f32.mrb[0].mxu0
        %v1605 = vadd.f32 0.0, %v1604
        %v1606 = vpop.f32.mrb[0].mxu0
        %v1607 = vadd.f32 0.0, %v1606
        %v1608 = vpop.f32.mrb[0].mxu0
        %v1609 = vadd.f32 0.0, %v1608
        %1610 = vmatprep.mubr.bf16.mxu0 0
        %1611 = vmatmul.mubr.bf16.gmra.mrb[0].mxu0 %v1534
        %v1612 = vpop.f32.mrb[0].mxu0
        %v1613 = vadd.f32 0.0, %v1612
        %v1614 = vpop.f32.mrb[0].mxu0
        %v1615 = vadd.f32 0.0, %v1614
        %v1616 = vpop.f32.mrb[0].mxu0
        %v1617 = vadd.f32 0.0, %v1616
        %v1618 = vpop.f32.mrb[0].mxu0
        %v1619 = vadd.f32 0.0, %v1618
        %1620 = vmatprep.mubr.bf16.mxu0 0
        %1621 = vmatmul.mubr.bf16.gmra.mrb[0].mxu0 %v1537
        %v1622 = vpop.f32.mrb[0].mxu0
        %v1623 = vadd.f32 0.0, %v1622
        %v1624 = vpop.f32.mrb[0].mxu0
        %v1625 = vadd.f32 0.0, %v1624
        %v1626 = vpop.f32.mrb[0].mxu0
        %v1627 = vadd.f32 0.0, %v1626
        %v1628 = vpop.f32.mrb[0].mxu0
        %v1629 = vadd.f32 0.0, %v1628
        %1630 = vmatprep.mubr.bf16.mxu0 0
        %1631 = vmatmul.mubr.bf16.gmra.mrb[0].mxu0 %v1540
        %v1632 = vpop.f32.mrb[0].mxu0
        %v1633 = vadd.f32 0.0, %v1632
        %v1634 = vpop.f32.mrb[0].mxu0
        %v1635 = vadd.f32 0.0, %v1634
        %v1636 = vpop.f32.mrb[0].mxu0
        %v1637 = vadd.f32 0.0, %v1636
        %v1638 = vpop.f32.mrb[0].mxu0
        %v1639 = vadd.f32 0.0, %v1638
        %1640 = vmatprep.mubr.bf16.mxu0 0
        %1641 = vmatmul.mubr.bf16.gmra.mrb[0].mxu0 %v1543
        %v1642 = vpop.f32.mrb[0].mxu0
        %v1643 = vadd.f32 0.0, %v1642
        %v1644 = vpop.f32.mrb[0].mxu0
        %v1645 = vadd.f32 0.0, %v1644
        %v1646 = vpop.f32.mrb[0].mxu0
        %v1647 = vadd.f32 0.0, %v1646
        %v1648 = vpop.f32.mrb[0].mxu0
        %v1649 = vadd.f32 0.0, %v1648
        %1650 = vmatprep.mubr.bf16.mxu0 0
        %1651 = vmatmul.mubr.bf16.gmra.mrb[0].mxu0 %v1546
        %v1652 = vpop.f32.mrb[0].mxu0
        %v1653 = vadd.f32 0.0, %v1652
        %v1654 = vpop.f32.mrb[0].mxu0
        %v1655 = vadd.f32 0.0, %v1654
        %v1656 = vpop.f32.mrb[0].mxu0
        %v1657 = vadd.f32 0.0, %v1656
        %v1658 = vpop.f32.mrb[0].mxu0
        %v1659 = vadd.f32 0.0, %v1658
        %1660 = vdwg.mxu0
        %v1661 = vmax.f32 %v1583, %v1585
        %1662 = vmax.xlane.f32.xlu0 %v1661
        %v1663 = vpop.xlane.xlu0 %1662
        %v1664 = vmax.f32 %v1587, %v1589
        %1665 = vmax.xlane.f32.xlu0 %v1664
        %v1666 = vpop.xlane.xlu0 %1665
        %v1667 = vmax.f32 %v1593, %v1595
        %1668 = vmax.xlane.f32.xlu0 %v1667
        %v1669 = vpop.xlane.xlu0 %1668
        %v1670 = vmax.f32 %v1597, %v1599
        %1671 = vmax.xlane.f32.xlu0 %v1670
        %v1672 = vpop.xlane.xlu0 %1671
        %v1673 = vmax.f32 %v1603, %v1605
        %1674 = vmax.xlane.f32.xlu0 %v1673
        %v1675 = vpop.xlane.xlu0 %1674
        %v1676 = vmax.f32 %v1607, %v1609
        %1677 = vmax.xlane.f32.xlu0 %v1676
        %v1678 = vpop.xlane.xlu0 %1677
        %v1679 = vmax.f32 %v1613, %v1615
        %1680 = vmax.xlane.f32.xlu0 %v1679
        %v1681 = vpop.xlane.xlu0 %1680
        %v1682 = vmax.f32 %v1617, %v1619
        %1683 = vmax.xlane.f32.xlu0 %v1682
        %v1684 = vpop.xlane.xlu0 %1683
        %v1685 = vmax.f32 %v1623, %v1625
        %1686 = vmax.xlane.f32.xlu0 %v1685
        %v1687 = vpop.xlane.xlu0 %1686
        %v1688 = vmax.f32 %v1627, %v1629
        %1689 = vmax.xlane.f32.xlu0 %v1688
        %v1690 = vpop.xlane.xlu0 %1689
        %v1691 = vmax.f32 %v1633, %v1635
        %1692 = vmax.xlane.f32.xlu0 %v1691
        %v1693 = vpop.xlane.xlu0 %1692
        %v1694 = vmax.f32 %v1637, %v1639
        %1695 = vmax.xlane.f32.xlu0 %v1694
        %v1696 = vpop.xlane.xlu0 %1695
        %v1697 = vmax.f32 %v1643, %v1645
        %1698 = vmax.xlane.f32.xlu0 %v1697
        %v1699 = vpop.xlane.xlu0 %1698
        %v1700 = vmax.f32 %v1647, %v1649
        %1701 = vmax.xlane.f32.xlu0 %v1700
        %v1702 = vpop.xlane.xlu0 %1701
        %v1703 = vmax.f32 %v1653, %v1655
        %1704 = vmax.xlane.f32.xlu0 %v1703
        %v1705 = vpop.xlane.xlu0 %1704
        %v1706 = vmax.f32 %v1657, %v1659
        %1707 = vmax.xlane.f32.xlu0 %v1706
        %v1708 = vpop.xlane.xlu0 %1707
        %v1709 = vsub.f32 %v1583, %v1663
        %v1710 = vsub.f32 %v1585, %v1663
        %v1711 = vsub.f32 %v1587, %v1666
        %v1712 = vsub.f32 %v1589, %v1666
        %v1713 = vsub.f32 %v1593, %v1669
        %v1714 = vsub.f32 %v1595, %v1669
        %v1715 = vsub.f32 %v1597, %v1672
        %v1716 = vsub.f32 %v1599, %v1672
        %v1717 = vsub.f32 %v1603, %v1675
        %v1718 = vsub.f32 %v1605, %v1675
        %v1719 = vsub.f32 %v1607, %v1678
        %v1720 = vsub.f32 %v1609, %v1678
        %v1721 = vsub.f32 %v1613, %v1681
        %v1722 = vsub.f32 %v1615, %v1681
        %v1723 = vsub.f32 %v1617, %v1684
        %v1724 = vsub.f32 %v1619, %v1684
        %v1725 = vsub.f32 %v1623, %v1687
        %v1726 = vsub.f32 %v1625, %v1687
        %v1727 = vsub.f32 %v1627, %v1690
        %v1728 = vsub.f32 %v1629, %v1690
        %v1729 = vsub.f32 %v1633, %v1693
        %v1730 = vsub.f32 %v1635, %v1693
        %v1731 = vsub.f32 %v1637, %v1696
        %v1732 = vsub.f32 %v1639, %v1696
        %v1733 = vsub.f32 %v1643, %v1699
        %v1734 = vsub.f32 %v1645, %v1699
        %v1735 = vsub.f32 %v1647, %v1702
        %v1736 = vsub.f32 %v1649, %v1702
        %v1737 = vsub.f32 %v1653, %v1705
        %v1738 = vsub.f32 %v1655, %v1705
        %v1739 = vsub.f32 %v1657, %v1708
        %v1740 = vsub.f32 %v1659, %v1708
        %v1741 = vmul.f32 %v1709, 1.442695
        %v1742 = vpow.pop %v1741
        %v1743 = vmul.f32 %v1710, 1.442695
        %v1744 = vpow.pop %v1743
        %v1745 = vmul.f32 %v1711, 1.442695
        %v1746 = vpow.pop %v1745
        %v1747 = vmul.f32 %v1712, 1.442695
        %v1748 = vpow.pop %v1747
        %v1749 = vmul.f32 %v1713, 1.442695
        %v1750 = vpow.pop %v1749
        %v1751 = vmul.f32 %v1714, 1.442695
        %v1752 = vpow.pop %v1751
        %v1753 = vmul.f32 %v1715, 1.442695
        %v1754 = vpow.pop %v1753
        %v1755 = vmul.f32 %v1716, 1.442695
        %v1756 = vpow.pop %v1755
        %v1757 = vmul.f32 %v1717, 1.442695
        %v1758 = vpow.pop %v1757
        %v1759 = vmul.f32 %v1718, 1.442695
        %v1760 = vpow.pop %v1759
        %v1761 = vmul.f32 %v1719, 1.442695
        %v1762 = vpow.pop %v1761
        %v1763 = vmul.f32 %v1720, 1.442695
        %v1764 = vpow.pop %v1763
        %v1765 = vmul.f32 %v1721, 1.442695
        %v1766 = vpow.pop %v1765
        %v1767 = vmul.f32 %v1722, 1.442695
        %v1768 = vpow.pop %v1767
        %v1769 = vmul.f32 %v1723, 1.442695
        %v1770 = vpow.pop %v1769
        %v1771 = vmul.f32 %v1724, 1.442695
        %v1772 = vpow.pop %v1771
        %v1773 = vmul.f32 %v1725, 1.442695
        %v1774 = vpow.pop %v1773
        %v1775 = vmul.f32 %v1726, 1.442695
        %v1776 = vpow.pop %v1775
        %v1777 = vmul.f32 %v1727, 1.442695
        %v1778 = vpow.pop %v1777
        %v1779 = vmul.f32 %v1728, 1.442695
        %v1780 = vpow.pop %v1779
        %v1781 = vmul.f32 %v1729, 1.442695
        %v1782 = vpow.pop %v1781
        %v1783 = vmul.f32 %v1730, 1.442695
        %v1784 = vpow.pop %v1783
        %v1785 = vmul.f32 %v1731, 1.442695
        %v1786 = vpow.pop %v1785
        %v1787 = vmul.f32 %v1732, 1.442695
        %v1788 = vpow.pop %v1787
        %v1789 = vmul.f32 %v1733, 1.442695
        %v1790 = vpow.pop %v1789
        %v1791 = vmul.f32 %v1734, 1.442695
        %v1792 = vpow.pop %v1791
        %v1793 = vmul.f32 %v1735, 1.442695
        %v1794 = vpow.pop %v1793
        %v1795 = vmul.f32 %v1736, 1.442695
        %v1796 = vpow.pop %v1795
        %v1797 = vmul.f32 %v1737, 1.442695
        %v1798 = vpow.pop %v1797
        %v1799 = vmul.f32 %v1738, 1.442695
        %v1800 = vpow.pop %v1799
        %v1801 = vmul.f32 %v1739, 1.442695
        %v1802 = vpow.pop %v1801
        %v1803 = vmul.f32 %v1740, 1.442695
        %v1804 = vpow.pop %v1803
        %v1805 = vadd.f32 %v1742, %v1744
        %1806 = vadd.xlane.f32.xlu0 %v1805
        %v1807 = vpop.xlane.xlu0 %1806
        %v1808 = vadd.f32 %v1746, %v1748
        %1809 = vadd.xlane.f32.xlu0 %v1808
        %v1810 = vpop.xlane.xlu0 %1809
        %v1811 = vadd.f32 %v1750, %v1752
        %1812 = vadd.xlane.f32.xlu0 %v1811
        %v1813 = vpop.xlane.xlu0 %1812
        %v1814 = vadd.f32 %v1754, %v1756
        %1815 = vadd.xlane.f32.xlu0 %v1814
        %v1816 = vpop.xlane.xlu0 %1815
        %v1817 = vadd.f32 %v1758, %v1760
        %1818 = vadd.xlane.f32.xlu0 %v1817
        %v1819 = vpop.xlane.xlu0 %1818
        %v1820 = vadd.f32 %v1762, %v1764
        %1821 = vadd.xlane.f32.xlu0 %v1820
        %v1822 = vpop.xlane.xlu0 %1821
        %v1823 = vadd.f32 %v1766, %v1768
        %1824 = vadd.xlane.f32.xlu0 %v1823
        %v1825 = vpop.xlane.xlu0 %1824
        %v1826 = vadd.f32 %v1770, %v1772
        %1827 = vadd.xlane.f32.xlu0 %v1826
        %v1828 = vpop.xlane.xlu0 %1827
        %v1829 = vadd.f32 %v1774, %v1776
        %1830 = vadd.xlane.f32.xlu0 %v1829
        %v1831 = vpop.xlane.xlu0 %1830
        %v1832 = vadd.f32 %v1778, %v1780
        %1833 = vadd.xlane.f32.xlu0 %v1832
        %v1834 = vpop.xlane.xlu0 %1833
        %v1835 = vadd.f32 %v1782, %v1784
        %1836 = vadd.xlane.f32.xlu0 %v1835
        %v1837 = vpop.xlane.xlu0 %1836
        %v1838 = vadd.f32 %v1786, %v1788
        %1839 = vadd.xlane.f32.xlu0 %v1838
        %v1840 = vpop.xlane.xlu0 %1839
        %v1841 = vadd.f32 %v1790, %v1792
        %1842 = vadd.xlane.f32.xlu0 %v1841
        %v1843 = vpop.xlane.xlu0 %1842
        %v1844 = vadd.f32 %v1794, %v1796
        %1845 = vadd.xlane.f32.xlu0 %v1844
        %v1846 = vpop.xlane.xlu0 %1845
        %v1847 = vadd.f32 %v1798, %v1800
        %1848 = vadd.xlane.f32.xlu0 %v1847
        %v1849 = vpop.xlane.xlu0 %1848
        %v1850 = vadd.f32 %v1802, %v1804
        %1851 = vadd.xlane.f32.xlu0 %v1850
        %v1852 = vpop.xlane.xlu0 %1851
        %v1853 = vrcp.pop %v1807
        %v1854 = vrcp.pop %v1810
        %v1855 = vrcp.pop %v1813
        %v1856 = vrcp.pop %v1816
        %v1857 = vrcp.pop %v1819
        %v1858 = vrcp.pop %v1822
        %v1859 = vrcp.pop %v1825
        %v1860 = vrcp.pop %v1828
        %v1861 = vrcp.pop %v1831
        %v1862 = vrcp.pop %v1834
        %v1863 = vrcp.pop %v1837
        %v1864 = vrcp.pop %v1840
        %v1865 = vrcp.pop %v1843
        %v1866 = vrcp.pop %v1846
        %v1867 = vrcp.pop %v1849
        %v1868 = vrcp.pop %v1852
        %v1869 = vmul.f32 %v1742, %v1853
        %v1870 = vmul.f32 %v1744, %v1853
        %v1871 = vmul.f32 %v1746, %v1854
        %v1872 = vmul.f32 %v1748, %v1854
        %v1873 = vmul.f32 %v1750, %v1855
        %v1874 = vmul.f32 %v1752, %v1855
        %v1875 = vmul.f32 %v1754, %v1856
        %v1876 = vmul.f32 %v1756, %v1856
        %v1877 = vmul.f32 %v1758, %v1857
        %v1878 = vmul.f32 %v1760, %v1857
        %v1879 = vmul.f32 %v1762, %v1858
        %v1880 = vmul.f32 %v1764, %v1858
        %v1881 = vmul.f32 %v1766, %v1859
        %v1882 = vmul.f32 %v1768, %v1859
        %v1883 = vmul.f32 %v1770, %v1860
        %v1884 = vmul.f32 %v1772, %v1860
        %v1885 = vmul.f32 %v1774, %v1861
        %v1886 = vmul.f32 %v1776, %v1861
        %v1887 = vmul.f32 %v1778, %v1862
        %v1888 = vmul.f32 %v1780, %v1862
        %v1889 = vmul.f32 %v1782, %v1863
        %v1890 = vmul.f32 %v1784, %v1863
        %v1891 = vmul.f32 %v1786, %v1864
        %v1892 = vmul.f32 %v1788, %v1864
        %v1893 = vmul.f32 %v1790, %v1865
        %v1894 = vmul.f32 %v1792, %v1865
        %v1895 = vmul.f32 %v1794, %v1866
        %v1896 = vmul.f32 %v1796, %v1866
        %v1897 = vmul.f32 %v1798, %v1867
        %v1898 = vmul.f32 %v1800, %v1867
        %v1899 = vmul.f32 %v1802, %v1868
        %v1900 = vmul.f32 %v1804, %v1868
        %v1901 = vpack.c.bf16 %v1871, %v1869
        %v1902 = vpack.c.bf16 %v1872, %v1870
        %v1903 = vpack.c.bf16 %v1875, %v1873
        %v1904 = vpack.c.bf16 %v1876, %v1874
        %v1905 = vpack.c.bf16 %v1879, %v1877
        %v1906 = vpack.c.bf16 %v1880, %v1878
        %v1907 = vpack.c.bf16 %v1883, %v1881
        %v1908 = vpack.c.bf16 %v1884, %v1882
        %v1909 = vpack.c.bf16 %v1887, %v1885
        %v1910 = vpack.c.bf16 %v1888, %v1886
        %v1911 = vpack.c.bf16 %v1891, %v1889
        %v1912 = vpack.c.bf16 %v1892, %v1890
        %v1913 = vpack.c.bf16 %v1895, %v1893
        %v1914 = vpack.c.bf16 %v1896, %v1894
        %v1915 = vpack.c.bf16 %v1899, %v1897
        %v1916 = vpack.c.bf16 %v1900, %v1898
        %1917 = vmatprep.subr.bf16.mxu0 %v1902
        %1918 = vmatpush1.bf16.xpose.msra.mxu0 %v1901
        %1919 = vmatprep.subr.bf16.mxu0 %v1904
        %1920 = vmatpush1.bf16.xpose.msra.mxu0 %v1903
        %1921 = vmatprep.subr.bf16.mxu0 %v1906
        %1922 = vmatpush1.bf16.xpose.msra.mxu0 %v1905
        %1923 = vmatprep.subr.bf16.mxu0 %v1908
        %1924 = vmatpush1.bf16.xpose.msra.mxu0 %v1907
        %1925 = vmatprep.subr.bf16.mxu0 %v1910
        %1926 = vmatpush1.bf16.xpose.msra.mxu0 %v1909
        %1927 = vmatprep.subr.bf16.mxu0 %v1912
        %1928 = vmatpush1.bf16.xpose.msra.mxu0 %v1911
        %1929 = vmatprep.subr.bf16.mxu0 %v1914
        %1930 = vmatpush1.bf16.xpose.msra.mxu0 %v1913
        %1931 = vmatprep.subr.bf16.mxu0 %v1916
        %1932 = vmatpush1.bf16.xpose.msra.mxu0 %v1915
        %1933 = vmatprep.subr.bf16.mxu0 0
        %1934 = vmatpush1.bf16.xpose.msra.mxu0 0
        %1935 = vmatprep.subr.bf16.mxu0 0
        %1936 = vmatpush1.bf16.xpose.msra.mxu0 0
        %1937 = vmatprep.subr.bf16.mxu0 0
        %1938 = vmatpush1.bf16.xpose.msra.mxu0 0
        %1939 = vmatprep.subr.bf16.mxu0 0
        %1940 = vmatpush1.bf16.xpose.msra.mxu0 0
        %1941 = vmatprep.subr.bf16.mxu0 0
        %1942 = vmatpush1.bf16.xpose.msra.mxu0 0
        %1943 = vmatprep.subr.bf16.mxu0 0
        %1944 = vmatpush1.bf16.xpose.msra.mxu0 0
        %1945 = vmatprep.subr.bf16.mxu0 0
        %1946 = vmatpush1.bf16.xpose.msra.mxu0 0
        %1947 = vmatprep.subr.bf16.mxu0 0
        %1948 = vmatpush1.bf16.xpose.msra.mxu0 0
        %1949 = vmatprep.mubr.bf16.mxu0 %v1523
        %1950 = vmatmul.mubr.bf16.gmra.mrb[0].mxu0 %v1522
        %v1951 = vpop.f32.mrb[0].mxu0
        %v1952 = vadd.f32 0.0, %v1951
        %v1953 = vpop.f32.mrb[0].mxu0
        %v1954 = vpop.f32.mrb[0].mxu0
        %v1955 = vadd.f32 0.0, %v1954
        %v1956 = vpop.f32.mrb[0].mxu0
        %1957 = vdwg.mxu0
        %v1958 = vld [vmem:[#allocation7] sm:$0xff]
        %v1959 = vld [vmem:[#allocation7 + $0x8] sm:$0xff]
        %v1960 = vld [vmem:[#allocation7 + $0x10] sm:$0xff]
        %v1961 = vld [vmem:[#allocation7 + $0x18] sm:$0xff]
        %v1962 = vpack.c.bf16 %v1959, %v1958
        %v1963 = vpack.c.bf16 %v1961, %v1960
        %v1964 = vpack.c.bf16 %v1461, %v1458
        %v1965 = vpack.c.bf16 %v1955, %v1952
        %v1967 = vsel %vm481, %v1962, 0
        %v1970 = vsel %vm481, %v1963, 0
        %1972 = vmatprep.subr.bf16.mxu0 0
        %1973 = vmatpush1.bf16.msra.mxu0 %v1964
        %1974 = vmatprep.subr.bf16.mxu0 0
        %1975 = vmatpush1.bf16.msra.mxu0 %v1965
        %1976 = vmatprep.subr.bf16.mxu0 0
        %1977 = vmatpush1.bf16.msra.mxu0 0
        %1978 = vmatprep.subr.bf16.mxu0 0
        %1979 = vmatpush1.bf16.msra.mxu0 0
        %1980 = vmatprep.subr.bf16.mxu0 0
        %1981 = vmatpush1.bf16.msra.mxu0 0
        %1982 = vmatprep.subr.bf16.mxu0 0
        %1983 = vmatpush1.bf16.msra.mxu0 0
        %1984 = vmatprep.subr.bf16.mxu0 0
        %1985 = vmatpush1.bf16.msra.mxu0 0
        %1986 = vmatprep.subr.bf16.mxu0 0
        %1987 = vmatpush1.bf16.msra.mxu0 0
        %1988 = vmatprep.subr.bf16.mxu0 0
        %1989 = vmatpush1.bf16.msra.mxu0 0
        %1990 = vmatprep.subr.bf16.mxu0 0
        %1991 = vmatpush1.bf16.msra.mxu0 0
        %1992 = vmatprep.subr.bf16.mxu0 0
        %1993 = vmatpush1.bf16.msra.mxu0 0
        %1994 = vmatprep.subr.bf16.mxu0 0
        %1995 = vmatpush1.bf16.msra.mxu0 0
        %1996 = vmatprep.subr.bf16.mxu0 0
        %1997 = vmatpush1.bf16.msra.mxu0 0
        %1998 = vmatprep.subr.bf16.mxu0 0
        %1999 = vmatpush1.bf16.msra.mxu0 0
        %2000 = vmatprep.subr.bf16.mxu0 0
        %2001 = vmatpush1.bf16.msra.mxu0 0
        %2002 = vmatprep.subr.bf16.mxu0 0
        %2003 = vmatpush1.bf16.msra.mxu0 0
        %2004 = vmatprep.mubr.bf16.mxu0 0
        %2005 = vmatmul.mubr.bf16.gmra.mrb[0].mxu0 %v1967
        %v2006 = vpop.f32.mrb[0].mxu0
        %v2007 = vadd.f32 0.0, %v2006
        %v2008 = vpop.f32.mrb[0].mxu0
        %v2009 = vpop.f32.mrb[0].mxu0
        %v2010 = vadd.f32 0.0, %v2009
        %v2011 = vpop.f32.mrb[0].mxu0
        %2012 = vmatprep.mubr.bf16.mxu0 0
        %2013 = vmatmul.mubr.bf16.gmra.mrb[0].mxu0 %v1970
        %v2014 = vpop.f32.mrb[0].mxu0
        %v2015 = vadd.f32 0.0, %v2014
        %v2016 = vpop.f32.mrb[0].mxu0
        %v2017 = vpop.f32.mrb[0].mxu0
        %v2018 = vadd.f32 0.0, %v2017
        %v2019 = vpop.f32.mrb[0].mxu0
        %2020 = vdwg.mxu0
        %v2021 = vld [vmem:[%s8] sm:$0xff]
        %v2022 = vld [vmem:[%s8 + $0x8] sm:$0xff]
        %v2023 = vld [vmem:[%s8 + $0x10] sm:$0xff]
        %v2024 = vld [vmem:[%s8 + $0x18] sm:$0xff]
        %2026 = vset.pattern.permute.xlu0 0
        %2027 = vperm.xlu0 %2026, %v2021
        %v2028 = vpop.permute.xlu0 %2027
        %2031 = vset.pattern.permute.xlu0 0
        %2032 = vperm.xlu0 %2031, %v2022
        %v2033 = vpop.permute.xlu0 %2032
        %2036 = vset.pattern.permute.xlu0 0
        %2037 = vperm.xlu0 %2036, %v2023
        %v2038 = vpop.permute.xlu0 %2037
        %2041 = vset.pattern.permute.xlu0 0
        %2042 = vperm.xlu0 %2041, %v2024
        %v2043 = vpop.permute.xlu0 %2042
        %v2045 = vadd.f32 %v426, %v2028
        %v2046 = vadd.f32 %v427, %v2033
        %v2047 = vadd.f32 %v428, %v2038
        %v2048 = vadd.f32 %v429, %v2043
        %v2049 = vadd.f32 %v2045, %v2007
        %v2050 = vadd.f32 %v2046, %v2010
        %v2051 = vadd.f32 %v2047, %v2015
        %v2052 = vadd.f32 %v2048, %v2018
        %2053 = vst [vmem:[%s411] sm:$0xff] %v2049
        %2054 = vst [vmem:[%s411 + $0x8] sm:$0xff] %v2050
        %2055 = vst [vmem:[%s411 + $0x10] sm:$0xff] %v2051
        %2056 = vst [vmem:[%s411 + $0x18] sm:$0xff] %v2052
        %s2057 = sand.u32 %s250, 1
        %s2058 = scalar_lea.sflag [#allocation4], %s2057
        %s2059 = sand.u32 %s250, 1
        %s2060 = smul.addr %s2059, 32
        %s2061 = scalar_lea.vmem [#allocation8], %s2060
        // Predicated region
        $region69: #{tpu_custom_call.1} parent=55 // pred_check
          %p2062 = pneg %p260
        $region70: #{tpu_custom_call.1} parent=55 // pred_check_branch
          %2064 = sbr.rel (%p2062) target = $region72
        $region71: #{tpu_custom_call.1} parent=55 // pred_region
          %s2066 = ssub.s32 512, 512
          %2067 = vsyncadd %s2058, %s2066
          %s2068 = smul.addr %s31, 8
          %s2069 = sadd.s32 %s32, %s2068
          %s2070 = smul.addr %s2069, 128
          %s2071 = scalar_lea.hbm %s9, %s2070
          %s2072 = sshll.u32 %s2061, 4
          %s2073 = int_to_ptr.vmem [resolvable:$true] %s2072
          %2078 = dma.vmem_to_hbm [thread:$0]  %s2073, 512, %s2071, %s2058, 128, 256, 8
        $region72: #{tpu_custom_call.1} parent=55 // pred_fallthru
          _
      $region56: #{tpu_custom_call.1} parent=5 // pred_fallthru
        _
      %p2079 = scmp.le.s32.totalorder 2, %s22
      // Predicated region
      $region73: #{tpu_custom_call.1} parent=5 // pred_check
        %p2080 = pneg %p2079
      $region74: #{tpu_custom_call.1} parent=5 // pred_check_branch
        %2082 = sbr.rel (%p2080) target = $region76
      $region75: #{tpu_custom_call.1} parent=5 // pred_region
        %s2083 = ssub.s32 %s22, 2
        // Predicated region
        $region77: #{tpu_custom_call.1} parent=75 // pred_check
          %p2084 = pneg %p266
        $region78: #{tpu_custom_call.1} parent=75 // pred_check_branch
          %2086 = sbr.rel (%p2084) target = $region80
        $region79: #{tpu_custom_call.1} parent=75 // pred_region
          %s2087 = sand.u32 %s251, 1
          %s2088 = scalar_lea.sflag [#allocation4], %s2087
          %s2089 = sand.u32 %s251, 1
          %s2090 = smul.addr %s2089, 32
          %s2091 = scalar_lea.vmem [#allocation8], %s2090
          %2092 = dma.done %s2088, 512
        $region80: #{tpu_custom_call.1} parent=75 // pred_fallthru
          _
      $region76: #{tpu_custom_call.1} parent=5 // pred_fallthru
        _
    $region6: #{tpu_custom_call.1} parent=1 // loop_footer
      %s26 = sadd.s32 1, %s22
    $region7: #{tpu_custom_call.1} parent=1 // loop_footer_branch
      %21 = sbr.rel target = $region3
    $region8: #{tpu_custom_call.1} parent=1 // loop_exit
      _
    %2093 = vsyncpa [#allocation3], 1
    %s2094 = scalar_lea.sflag [#allocation3], 1
    %2095 = vsyncpa %s2094, 1
    %2096 = vsyncpa [#allocation6], 1
    %2097 = vsyncpa [#allocation4], 1
    %s2098 = scalar_lea.sflag [#allocation4], 1
    %2099 = vsyncpa %s2098, 1

</llo_original>
